<compile_context>
chip_gen: v7x
topology: tpu7x:2x2x1
jax: 0.10.0
libtpu: 0.0.40
codegen_flags: <defaults>
</compile_context>

<pallas_src>
import functools

import jax
import jax.numpy as jnp
from jax.experimental import pallas as pl
from jax.experimental.pallas import tpu as pltpu

INPUT_DIM = 320
HIDDEN_DIMS = [64, 128, 256]          # nested Matryoshka widths; encoder outputs HIDDEN_DIMS[-1]
_H = HIDDEN_DIMS[-1]                  # 256
_SECTION = 384                        # next multiple of 128 >= INPUT_DIM (lane-aligned section)
_NSEC = len(HIDDEN_DIMS)              # 3 -> fused decoder output width = 1152


def _round_up(n, m):
    return ((n + m - 1) // m) * m


def _device_kind():
    try:
        return jax.devices()[0].device_kind.lower()
    except Exception:
        return ""


def _default_fuse():
    # Fused zero-padded decoder is neutral-to-better on 256-deep MXUs (v6e/v7x),
    # but wastes ~1.5x MXU passes on 128-deep MXUs (v2..v5) -> keep unfused there.
    kind = _device_kind()
    return not any(t in kind for t in ("v2", "v3", "v4", "v5"))


def _pick_tm(n):
    """Row tile: fill the MXU M-dim and amortize pipeline overhead while keeping
    row padding minimal; force an even grid on v7x (2 TensorCores)."""
    kind = _device_kind()
    if "v7" in kind or "7x" in kind:
        target, min_parts, want_even = 512, 2, True
    elif "v6" in kind or "v5" in kind:
        target, min_parts, want_even = 1024, 1, False
    else:
        target, min_parts, want_even = 512, 1, False
    parts = max(min_parts, pl.cdiv(n, target))
    if want_even and parts % 2:
        parts += 1
    return max(8, _round_up(pl.cdiv(n, parts), 8))


# --------------------------------------------------------------------------- #
# Kernels
# --------------------------------------------------------------------------- #

def _kernel_fused(x_ref, we_ref, be_ref, wcat_ref, bcat_ref,
                  z_ref, r0_ref, r1_ref, r2_ref):
    # Encoder: Linear(320 -> 256) + ReLU.  bf16 MXU operands, f32 accumulation.
    x16 = x_ref[...].astype(jnp.bfloat16)
    z = jnp.dot(x16, we_ref[...], preferred_element_type=jnp.float32) + be_ref[...]
    z = jnp.maximum(z, 0.0)
    z_ref[...] = z.astype(z_ref.dtype)

    # Fused nested decoders: one K=256 / N=1152 bf16 matmul.  Zero-padded prefix
    # weight rows reproduce the z[:, :dim] slice semantics exactly.
    z16 = z.astype(jnp.bfloat16)
    rcat = jnp.dot(z16, wcat_ref[...], preferred_element_type=jnp.float32) + bcat_ref[...]
    # Each 384-wide section starts on a 128-lane boundary -> cheap static slices.
    r0_ref[...] = rcat[:, 0:INPUT_DIM].astype(r0_ref.dtype)
    r1_ref[...] = rcat[:, _SECTION:_SECTION + INPUT_DIM].astype(r1_ref.dtype)
    r2_ref[...] = rcat[:, 2 * _SECTION:2 * _SECTION + INPUT_DIM].astype(r2_ref.dtype)


def _kernel_unfused(x_ref, we_ref, be_ref, w0_ref, b0_ref, w1_ref, b1_ref,
                    w2_ref, b2_ref, z_ref, r0_ref, r1_ref, r2_ref):
    x16 = x_ref[...].astype(jnp.bfloat16)
    z = jnp.dot(x16, we_ref[...], preferred_element_type=jnp.float32) + be_ref[...]
    z = jnp.maximum(z, 0.0)
    z_ref[...] = z.astype(z_ref.dtype)

    # Three prefix decoders (K = 64 / 128 / 256) without zero padding — cheaper
    # on 128-deep MXUs (v5e and older).
    z16 = z.astype(jnp.bfloat16)
    r0 = jnp.dot(z16[:, :HIDDEN_DIMS[0]], w0_ref[...],
                 preferred_element_type=jnp.float32) + b0_ref[...]
    r1 = jnp.dot(z16[:, :HIDDEN_DIMS[1]], w1_ref[...],
                 preferred_element_type=jnp.float32) + b1_ref[...]
    r2 = jnp.dot(z16, w2_ref[...],
                 preferred_element_type=jnp.float32) + b2_ref[...]
    r0_ref[...] = r0.astype(r0_ref.dtype)
    r1_ref[...] = r1.astype(r1_ref.dtype)
    r2_ref[...] = r2.astype(r2_ref.dtype)


# --------------------------------------------------------------------------- #
# Parameter preparation (do this ONCE per parameter set and reuse)
# --------------------------------------------------------------------------- #

def _fuse_decoder_params(decoders):
    """Pack the nested decoders into one [256, 3*384] bf16 weight + [1, 3*384] f32 bias."""
    w_blocks, b_blocks = [], []
    for (w_t, b), hdim in zip(decoders, HIDDEN_DIMS):
        w_full = jnp.zeros((_H, _SECTION), jnp.float32).at[:hdim, :INPUT_DIM].set(
            w_t.astype(jnp.float32))
        b_full = jnp.zeros((1, _SECTION), jnp.float32).at[:, :INPUT_DIM].set(
            b.astype(jnp.float32).reshape(1, INPUT_DIM))
        w_blocks.append(w_full)
        b_blocks.append(b_full)
    wcat = jnp.concatenate(w_blocks, axis=1).astype(jnp.bfloat16)   # MXU operand
    bcat = jnp.concatenate(b_blocks, axis=1)                        # f32, added post-accum
    return wcat, bcat


def prepare_params(params, *, fuse=None):
    """One-time conversion of module params into kernel operands (bf16 weights,
    f32 biases, decoders optionally fused).  Cache the result across calls."""
    if fuse is None:
        fuse = _default_fuse()
    we_t, be = params["encoder"]
    enc = (we_t.astype(jnp.bfloat16), be.astype(jnp.float32).reshape(1, _H))
    if fuse:
        dec = _fuse_decoder_params(params["decoders"])
    else:
        dec = []
        for w_t, b in params["decoders"]:
            dec += [w_t.astype(jnp.bfloat16), b.astype(jnp.float32).reshape(1, INPUT_DIM)]
        dec = tuple(dec)
    return {"fuse": bool(fuse), "weights": enc + tuple(dec)}


# --------------------------------------------------------------------------- #
# Forward
# --------------------------------------------------------------------------- #

@functools.partial(jax.jit, static_argnames=("fuse", "tm", "single_buffer"))
def _forward_impl(x, weights, *, fuse, tm, single_buffer):
    N, D = x.shape
    assert D == INPUT_DIM
    n_pad = _round_up(N, tm)
    if n_pad != N:
        x = jnp.pad(x, ((0, n_pad - N), (0, 0)))

    def row_spec(shape):
        return pl.BlockSpec(shape, lambda i: (i, 0))

    def rep_spec(shape):
        # Constant index map -> weights stay VMEM-resident (no per-step re-DMA);
        # single-buffered when supported to free VMEM for larger row tiles.
        if single_buffer:
            return pl.BlockSpec(shape, lambda i: (0, 0), pipeline_mode=pl.Buffered(1))
        return pl.BlockSpec(shape, lambda i: (0, 0))

    enc_specs = [rep_spec((D, _H)), rep_spec((1, _H))]
    if fuse:
        kernel = _kernel_fused
        dec_specs = [rep_spec((_H, _NSEC * _SECTION)), rep_spec((1, _NSEC * _SECTION))]
        dec_flops_per_row = _H * _NSEC * _SECTION
    else:
        kernel = _kernel_unfused
        dec_specs = []
        for hdim in HIDDEN_DIMS:
            dec_specs += [rep_spec((hdim, D)), rep_spec((1, D))]
        dec_flops_per_row = sum(HIDDEN_DIMS) * D

    weight_bytes = sum(w.size * w.dtype.itemsize for w in weights)
    cost = pl.CostEstimate(
        flops=2 * n_pad * (D * _H + dec_flops_per_row),
        transcendentals=0,
        bytes_accessed=4 * n_pad * (D + _H + _NSEC * D) + weight_bytes,
    )

    grid_spec = pltpu.PrefetchScalarGridSpec(
        num_scalar_prefetch=0,
        grid=(n_pad // tm,),
        in_specs=[row_spec((tm, D))] + enc_specs + dec_specs,
        out_specs=[
            row_spec((tm, _H)),     # z
            row_spec((tm, D)),      # recon from first 64 latents
            row_spec((tm, D)),      # recon from first 128 latents
            row_spec((tm, D)),      # recon from first 256 latents
        ],
    )
    out_shape = (
        jax.ShapeDtypeStruct((n_pad, _H), jnp.float32),
        jax.ShapeDtypeStruct((n_pad, D), jnp.float32),
        jax.ShapeDtypeStruct((n_pad, D), jnp.float32),
        jax.ShapeDtypeStruct((n_pad, D), jnp.float32),
    )

    z, r0, r1, r2 = pl.pallas_call(
        kernel,
        out_shape=out_shape,
        grid_spec=grid_spec,
        compiler_params=pltpu.CompilerParams(
            dimension_semantics=("parallel",),                      # megacore-shardable rows
            vmem_limit_bytes=(48 if tm > 512 else 32) * 1024 * 1024,
        ),
        cost_estimate=cost,
    )(x, *weights)

    if n_pad != N:
        z, r0, r1, r2 = z[:N], r0[:N], r1[:N], r2[:N]
    return z, [r0, r1, r2]


_SINGLE_BUFFER_OK = True


def matryoshka_sae_forward(x, prepared):
    """x: [N, 320] float32.  prepared: output of prepare_params().
    Returns (z [N, 256] f32, [rec0, rec1, rec2] each [N, 320] f32)."""
    global _SINGLE_BUFFER_OK
    tm = _pick_tm(x.shape[0])
    kwargs = dict(fuse=prepared["fuse"], tm=tm)
    if _SINGLE_BUFFER_OK:
        try:
            return _forward_impl(x, prepared["weights"], single_buffer=True, **kwargs)
        except Exception:
            _SINGLE_BUFFER_OK = False   # pl.Buffered(1) unsupported here -> default buffering
    return _forward_impl(x, prepared["weights"], single_buffer=False, **kwargs)


# --------------------------------------------------------------------------- #
# Synthetic params / reference / self-test
# --------------------------------------------------------------------------- #

def init_params(key):
    """Deterministic synthetic parameters with the same shapes as the PyTorch module."""
    keys = jax.random.split(key, 8)
    D, H = INPUT_DIM, _H
    # Encoder: nn.Linear(D, H) -> weight [H, D]; store transposed [D, H].
    we_t = jax.random.normal(keys[0], (D, H), jnp.float32) * (1.0 / jnp.sqrt(D))
    be = jax.random.normal(keys[1], (1, H), jnp.float32) * 0.01
    decoders = []
    for i, hdim in enumerate(HIDDEN_DIMS):
        # nn.Linear(hdim, D) -> weight [D, hdim]; store transposed [hdim, D].
        w_t = jax.random.normal(keys[2 + 2 * i], (hdim, D), jnp.float32) * (1.0 / jnp.sqrt(hdim))
        b = jax.random.normal(keys[3 + 2 * i], (1, D), jnp.float32) * 0.01
        decoders.append((w_t, b))
    return {"encoder": (we_t, be), "decoders": decoders}


def reference_forward(x, params):
    """Pure-JAX f32 reference matching the PyTorch semantics (unfused decoders)."""
    we_t, be = params["encoder"]
    z = jnp.maximum(x @ we_t + be, 0.0)
    recons = []
    for (w_t, b), hdim in zip(params["decoders"], HIDDEN_DIMS):
        recons.append(z[:, :hdim] @ w_t + b)
    return z, recons


if __name__ == "__main__":
    key = jax.random.PRNGKey(0)
    pkey, xkey1, xkey2 = jax.random.split(key, 3)
    params = init_params(pkey)
    prepared = prepare_params(params)     # one-time bf16 cast + decoder fusion

    # Small shape consistent with the module's flattened [B*seq, 320] input.
    B, SEQ = 2, 8
    x_small = jax.random.normal(xkey1, (B * SEQ, INPUT_DIM), jnp.float32)
    # Also exercise the multi-tile + ragged-tail path (B=2 of the module's seq=370).
    x_tail = jax.random.normal(xkey2, (2 * 370, INPUT_DIM), jnp.float32)

    for x in (x_small, x_tail):
        z, recons = matryoshka_sae_forward(x, prepared)
        jax.block_until_ready((z, recons))

        z_ref, recons_ref = reference_forward(x, params)
        # Tolerances loosened vs. the f32 reference because the MXU operands are bf16.
        assert z.shape == z_ref.shape
        assert jnp.allclose(z, z_ref, atol=5e-2, rtol=5e-2)
        for r, rr in zip(recons, recons_ref):
            assert r.shape == rr.shape
            assert jnp.allclose(r, rr, atol=5e-2, rtol=5e-2)

    print("KERNEL_OK")
</pallas_src>

<mosaic_0001>
module attributes {stable_mosaic.version = 11 : i64} {
  func.func @_kernel_fused(%arg0: i32, %arg1: memref<16x320xf32, #tpu.memory_space<vmem>>, %arg2: memref<320x256xbf16, #tpu.memory_space<vmem>>, %arg3: memref<1x256xf32, #tpu.memory_space<vmem>>, %arg4: memref<256x1152xbf16, #tpu.memory_space<vmem>>, %arg5: memref<1x1152xf32, #tpu.memory_space<vmem>>, %arg6: memref<16x256xf32, #tpu.memory_space<vmem>>, %arg7: memref<16x320xf32, #tpu.memory_space<vmem>>, %arg8: memref<16x320xf32, #tpu.memory_space<vmem>>, %arg9: memref<16x320xf32, #tpu.memory_space<vmem>>) attributes {dimension_semantics = [#tpu.dimension_semantics<parallel>], iteration_bounds = array<i64: 1>, scalar_prefetch = 0 : i64, scratch_operands = 0 : i64, tpu.core_type = #tpu.core_type<tc>, window_params = [{transform_indices = @transform_0, window_bounds = array<i64: 16, 320>}, {pipeline_mode = #tpu.pipeline_mode<synchronous>, transform_indices = @transform_1, window_bounds = array<i64: 320, 256>}, {pipeline_mode = #tpu.pipeline_mode<synchronous>, transform_indices = @transform_2, window_bounds = array<i64: 1, 256>}, {pipeline_mode = #tpu.pipeline_mode<synchronous>, transform_indices = @transform_3, window_bounds = array<i64: 256, 1152>}, {pipeline_mode = #tpu.pipeline_mode<synchronous>, transform_indices = @transform_4, window_bounds = array<i64: 1, 1152>}, {transform_indices = @transform_5, window_bounds = array<i64: 16, 256>}, {transform_indices = @transform_6, window_bounds = array<i64: 16, 320>}, {transform_indices = @transform_7, window_bounds = array<i64: 16, 320>}, {transform_indices = @transform_8, window_bounds = array<i64: 16, 320>}]} {
    %c0 = arith.constant 0 : index
    %c0_0 = arith.constant 0 : index
    %0 = vector.load %arg1[%c0, %c0_0] : memref<16x320xf32, #tpu.memory_space<vmem>>, vector<16x320xf32>
    %1 = arith.truncf %0 : vector<16x320xf32> to vector<16x320xbf16>
    %c0_1 = arith.constant 0 : index
    %c0_2 = arith.constant 0 : index
    %2 = vector.load %arg2[%c0_1, %c0_2] : memref<320x256xbf16, #tpu.memory_space<vmem>>, vector<320x256xbf16>
    %cst = arith.constant dense<0.000000e+00> : vector<16x256xf32>
    %3 = tpu.matmul %1, %2, %cst {dimension_numbers = #tpu.dot_dimension_numbers<[1], [0], [0], [1], [0, 0, 1, 1], [], []>} : vector<16x320xbf16>, vector<320x256xbf16>, vector<16x256xf32> -> vector<16x256xf32>
    %c0_3 = arith.constant 0 : index
    %c0_4 = arith.constant 0 : index
    %4 = vector.load %arg3[%c0_3, %c0_4] : memref<1x256xf32, #tpu.memory_space<vmem>>, vector<1x256xf32>
    %5 = vector.broadcast %4 : vector<1x256xf32> to vector<16x256xf32>
    %6 = arith.addf %3, %5 : vector<16x256xf32>
    %cst_5 = arith.constant 0.000000e+00 : f32
    %7 = vector.broadcast %cst_5 : f32 to vector<16x256xf32>
    %8 = arith.maximumf %6, %7 : vector<16x256xf32>
    %c0_6 = arith.constant 0 : index
    %c0_7 = arith.constant 0 : index
    %9 = vector.load %arg6[%c0_6, %c0_7] : memref<16x256xf32, #tpu.memory_space<vmem>>, vector<16x256xf32>
    tpu.vector_store %arg6[%c0_6, %c0_7], %8 {strides = array<i32>} : memref<16x256xf32, #tpu.memory_space<vmem>>, vector<16x256xf32>,
    %10 = arith.truncf %8 : vector<16x256xf32> to vector<16x256xbf16>
    %c0_8 = arith.constant 0 : index
    %c0_9 = arith.constant 0 : index
    %11 = vector.load %arg4[%c0_8, %c0_9] : memref<256x1152xbf16, #tpu.memory_space<vmem>>, vector<256x1152xbf16>
    %cst_10 = arith.constant dense<0.000000e+00> : vector<16x1152xf32>
    %12 = tpu.matmul %10, %11, %cst_10 {dimension_numbers = #tpu.dot_dimension_numbers<[1], [0], [0], [1], [0, 0, 1, 1], [], []>} : vector<16x256xbf16>, vector<256x1152xbf16>, vector<16x1152xf32> -> vector<16x1152xf32>
    %c0_11 = arith.constant 0 : index
    %c0_12 = arith.constant 0 : index
    %13 = vector.load %arg5[%c0_11, %c0_12] : memref<1x1152xf32, #tpu.memory_space<vmem>>, vector<1x1152xf32>
    %14 = vector.broadcast %13 : vector<1x1152xf32> to vector<16x1152xf32>
    %15 = arith.addf %12, %14 : vector<16x1152xf32>
    %16 = vector.extract_strided_slice %15 {offsets = [0, 0], sizes = [16, 320], strides = [1, 1]} : vector<16x1152xf32> to vector<16x320xf32>
    %c0_13 = arith.constant 0 : index
    %c0_14 = arith.constant 0 : index
    %17 = vector.load %arg7[%c0_13, %c0_14] : memref<16x320xf32, #tpu.memory_space<vmem>>, vector<16x320xf32>
    tpu.vector_store %arg7[%c0_13, %c0_14], %16 {strides = array<i32>} : memref<16x320xf32, #tpu.memory_space<vmem>>, vector<16x320xf32>,
    %18 = vector.extract_strided_slice %15 {offsets = [0, 384], sizes = [16, 320], strides = [1, 1]} : vector<16x1152xf32> to vector<16x320xf32>
    %c0_15 = arith.constant 0 : index
    %c0_16 = arith.constant 0 : index
    %19 = vector.load %arg8[%c0_15, %c0_16] : memref<16x320xf32, #tpu.memory_space<vmem>>, vector<16x320xf32>
    tpu.vector_store %arg8[%c0_15, %c0_16], %18 {strides = array<i32>} : memref<16x320xf32, #tpu.memory_space<vmem>>, vector<16x320xf32>,
    %20 = vector.extract_strided_slice %15 {offsets = [0, 768], sizes = [16, 320], strides = [1, 1]} : vector<16x1152xf32> to vector<16x320xf32>
    %c0_17 = arith.constant 0 : index
    %c0_18 = arith.constant 0 : index
    %21 = vector.load %arg9[%c0_17, %c0_18] : memref<16x320xf32, #tpu.memory_space<vmem>>, vector<16x320xf32>
    tpu.vector_store %arg9[%c0_17, %c0_18], %20 {strides = array<i32>} : memref<16x320xf32, #tpu.memory_space<vmem>>, vector<16x320xf32>,
    return
  }
  func.func @transform_0(%arg0: i32) -> (i32, i32) {
    %c0_i32 = arith.constant 0 : i32
    %c0_i32_0 = arith.constant 0 : i32
    return %arg0, %c0_i32 : i32, i32
  }
  func.func @transform_1(%arg0: i32) -> (i32, i32) {
    %c0_i32 = arith.constant 0 : i32
    %c0_i32_0 = arith.constant 0 : i32
    %c0_i32_1 = arith.constant 0 : i32
    return %c0_i32, %c0_i32_0 : i32, i32
  }
  func.func @transform_2(%arg0: i32) -> (i32, i32) {
    %c0_i32 = arith.constant 0 : i32
    %c0_i32_0 = arith.constant 0 : i32
    %c0_i32_1 = arith.constant 0 : i32
    return %c0_i32, %c0_i32_0 : i32, i32
  }
  func.func @transform_3(%arg0: i32) -> (i32, i32) {
    %c0_i32 = arith.constant 0 : i32
    %c0_i32_0 = arith.constant 0 : i32
    %c0_i32_1 = arith.constant 0 : i32
    return %c0_i32, %c0_i32_0 : i32, i32
  }
  func.func @transform_4(%arg0: i32) -> (i32, i32) {
    %c0_i32 = arith.constant 0 : i32
    %c0_i32_0 = arith.constant 0 : i32
    %c0_i32_1 = arith.constant 0 : i32
    return %c0_i32, %c0_i32_0 : i32, i32
  }
  func.func @transform_5(%arg0: i32) -> (i32, i32) {
    %c0_i32 = arith.constant 0 : i32
    %c0_i32_0 = arith.constant 0 : i32
    return %arg0, %c0_i32 : i32, i32
  }
  func.func @transform_6(%arg0: i32) -> (i32, i32) {
    %c0_i32 = arith.constant 0 : i32
    %c0_i32_0 = arith.constant 0 : i32
    return %arg0, %c0_i32 : i32, i32
  }
  func.func @transform_7(%arg0: i32) -> (i32, i32) {
    %c0_i32 = arith.constant 0 : i32
    %c0_i32_0 = arith.constant 0 : i32
    return %arg0, %c0_i32 : i32, i32
  }
  func.func @transform_8(%arg0: i32) -> (i32, i32) {
    %c0_i32 = arith.constant 0 : i32
    %c0_i32_0 = arith.constant 0 : i32
    return %arg0, %c0_i32 : i32, i32
  }
}

module attributes {stable_mosaic.version = 11 : i64} {
  func.func @_kernel_fused(%arg0: i32, %arg1: memref<16x320xf32, #tpu.memory_space<vmem>>, %arg2: memref<320x256xbf16, #tpu.memory_space<vmem>>, %arg3: memref<1x256xf32, #tpu.memory_space<vmem>>, %arg4: memref<256x1152xbf16, #tpu.memory_space<vmem>>, %arg5: memref<1x1152xf32, #tpu.memory_space<vmem>>, %arg6: memref<16x256xf32, #tpu.memory_space<vmem>>, %arg7: memref<16x320xf32, #tpu.memory_space<vmem>>, %arg8: memref<16x320xf32, #tpu.memory_space<vmem>>, %arg9: memref<16x320xf32, #tpu.memory_space<vmem>>) attributes {dimension_semantics = [#tpu.dimension_semantics<parallel>], iteration_bounds = array<i64: 1>, scalar_prefetch = 0 : i64, scratch_operands = 0 : i64, tpu.core_type = #tpu.core_type<tc>, window_params = [{transform_indices = @transform_0, window_bounds = array<i64: 16, 320>}, {pipeline_mode = #tpu.pipeline_mode<synchronous>, transform_indices = @transform_1, window_bounds = array<i64: 320, 256>}, {pipeline_mode = #tpu.pipeline_mode<synchronous>, transform_indices = @transform_2, window_bounds = array<i64: 1, 256>}, {pipeline_mode = #tpu.pipeline_mode<synchronous>, transform_indices = @transform_3, window_bounds = array<i64: 256, 1152>}, {pipeline_mode = #tpu.pipeline_mode<synchronous>, transform_indices = @transform_4, window_bounds = array<i64: 1, 1152>}, {transform_indices = @transform_5, window_bounds = array<i64: 16, 256>}, {transform_indices = @transform_6, window_bounds = array<i64: 16, 320>}, {transform_indices = @transform_7, window_bounds = array<i64: 16, 320>}, {transform_indices = @transform_8, window_bounds = array<i64: 16, 320>}]} {
    %c0 = arith.constant 0 : index
    %c0_0 = arith.constant 0 : index
    %0 = vector.load %arg1[%c0, %c0_0] : memref<16x320xf32, #tpu.memory_space<vmem>>, vector<16x320xf32>
    %1 = arith.truncf %0 : vector<16x320xf32> to vector<16x320xbf16>
    %c0_1 = arith.constant 0 : index
    %c0_2 = arith.constant 0 : index
    %2 = vector.load %arg2[%c0_1, %c0_2] : memref<320x256xbf16, #tpu.memory_space<vmem>>, vector<320x256xbf16>
    %cst = arith.constant dense<0.000000e+00> : vector<16x256xf32>
    %3 = tpu.matmul %1, %2, %cst {dimension_numbers = #tpu.dot_dimension_numbers<[1], [0], [0], [1], [0, 0, 1, 1], [], []>} : vector<16x320xbf16>, vector<320x256xbf16>, vector<16x256xf32> -> vector<16x256xf32>
    %c0_3 = arith.constant 0 : index
    %c0_4 = arith.constant 0 : index
    %4 = vector.load %arg3[%c0_3, %c0_4] : memref<1x256xf32, #tpu.memory_space<vmem>>, vector<1x256xf32>
    %5 = vector.broadcast %4 : vector<1x256xf32> to vector<16x256xf32>
    %6 = arith.addf %3, %5 : vector<16x256xf32>
    %cst_5 = arith.constant 0.000000e+00 : f32
    %7 = vector.broadcast %cst_5 : f32 to vector<16x256xf32>
    %8 = arith.maximumf %6, %7 : vector<16x256xf32>
    %c0_6 = arith.constant 0 : index
    %c0_7 = arith.constant 0 : index
    %9 = vector.load %arg6[%c0_6, %c0_7] : memref<16x256xf32, #tpu.memory_space<vmem>>, vector<16x256xf32>
    tpu.vector_store %arg6[%c0_6, %c0_7], %8 {strides = array<i32>} : memref<16x256xf32, #tpu.memory_space<vmem>>, vector<16x256xf32>,
    %10 = arith.truncf %8 : vector<16x256xf32> to vector<16x256xbf16>
    %c0_8 = arith.constant 0 : index
    %c0_9 = arith.constant 0 : index
    %11 = vector.load %arg4[%c0_8, %c0_9] : memref<256x1152xbf16, #tpu.memory_space<vmem>>, vector<256x1152xbf16>
    %cst_10 = arith.constant dense<0.000000e+00> : vector<16x1152xf32>
    %12 = tpu.matmul %10, %11, %cst_10 {dimension_numbers = #tpu.dot_dimension_numbers<[1], [0], [0], [1], [0, 0, 1, 1], [], []>} : vector<16x256xbf16>, vector<256x1152xbf16>, vector<16x1152xf32> -> vector<16x1152xf32>
    %c0_11 = arith.constant 0 : index
    %c0_12 = arith.constant 0 : index
    %13 = vector.load %arg5[%c0_11, %c0_12] : memref<1x1152xf32, #tpu.memory_space<vmem>>, vector<1x1152xf32>
    %14 = vector.broadcast %13 : vector<1x1152xf32> to vector<16x1152xf32>
    %15 = arith.addf %12, %14 : vector<16x1152xf32>
    %16 = vector.extract_strided_slice %15 {offsets = [0, 0], sizes = [16, 320], strides = [1, 1]} : vector<16x1152xf32> to vector<16x320xf32>
    %c0_13 = arith.constant 0 : index
    %c0_14 = arith.constant 0 : index
    %17 = vector.load %arg7[%c0_13, %c0_14] : memref<16x320xf32, #tpu.memory_space<vmem>>, vector<16x320xf32>
    tpu.vector_store %arg7[%c0_13, %c0_14], %16 {strides = array<i32>} : memref<16x320xf32, #tpu.memory_space<vmem>>, vector<16x320xf32>,
    %18 = vector.extract_strided_slice %15 {offsets = [0, 384], sizes = [16, 320], strides = [1, 1]} : vector<16x1152xf32> to vector<16x320xf32>
    %c0_15 = arith.constant 0 : index
    %c0_16 = arith.constant 0 : index
    %19 = vector.load %arg8[%c0_15, %c0_16] : memref<16x320xf32, #tpu.memory_space<vmem>>, vector<16x320xf32>
    tpu.vector_store %arg8[%c0_15, %c0_16], %18 {strides = array<i32>} : memref<16x320xf32, #tpu.memory_space<vmem>>, vector<16x320xf32>,
    %20 = vector.extract_strided_slice %15 {offsets = [0, 768], sizes = [16, 320], strides = [1, 1]} : vector<16x1152xf32> to vector<16x320xf32>
    %c0_17 = arith.constant 0 : index
    %c0_18 = arith.constant 0 : index
    %21 = vector.load %arg9[%c0_17, %c0_18] : memref<16x320xf32, #tpu.memory_space<vmem>>, vector<16x320xf32>
    tpu.vector_store %arg9[%c0_17, %c0_18], %20 {strides = array<i32>} : memref<16x320xf32, #tpu.memory_space<vmem>>, vector<16x320xf32>,
    return
  }
  func.func @transform_0(%arg0: i32) -> (i32, i32) {
    %c0_i32 = arith.constant 0 : i32
    %c0_i32_0 = arith.constant 0 : i32
    return %arg0, %c0_i32 : i32, i32
  }
  func.func @transform_1(%arg0: i32) -> (i32, i32) {
    %c0_i32 = arith.constant 0 : i32
    %c0_i32_0 = arith.constant 0 : i32
    %c0_i32_1 = arith.constant 0 : i32
    return %c0_i32, %c0_i32_0 : i32, i32
  }
  func.func @transform_2(%arg0: i32) -> (i32, i32) {
    %c0_i32 = arith.constant 0 : i32
    %c0_i32_0 = arith.constant 0 : i32
    %c0_i32_1 = arith.constant 0 : i32
    return %c0_i32, %c0_i32_0 : i32, i32
  }
  func.func @transform_3(%arg0: i32) -> (i32, i32) {
    %c0_i32 = arith.constant 0 : i32
    %c0_i32_0 = arith.constant 0 : i32
    %c0_i32_1 = arith.constant 0 : i32
    return %c0_i32, %c0_i32_0 : i32, i32
  }
  func.func @transform_4(%arg0: i32) -> (i32, i32) {
    %c0_i32 = arith.constant 0 : i32
    %c0_i32_0 = arith.constant 0 : i32
    %c0_i32_1 = arith.constant 0 : i32
    return %c0_i32, %c0_i32_0 : i32, i32
  }
  func.func @transform_5(%arg0: i32) -> (i32, i32) {
    %c0_i32 = arith.constant 0 : i32
    %c0_i32_0 = arith.constant 0 : i32
    return %arg0, %c0_i32 : i32, i32
  }
  func.func @transform_6(%arg0: i32) -> (i32, i32) {
    %c0_i32 = arith.constant 0 : i32
    %c0_i32_0 = arith.constant 0 : i32
    return %arg0, %c0_i32 : i32, i32
  }
  func.func @transform_7(%arg0: i32) -> (i32, i32) {
    %c0_i32 = arith.constant 0 : i32
    %c0_i32_0 = arith.constant 0 : i32
    return %arg0, %c0_i32 : i32, i32
  }
  func.func @transform_8(%arg0: i32) -> (i32, i32) {
    %c0_i32 = arith.constant 0 : i32
    %c0_i32_0 = arith.constant 0 : i32
    return %arg0, %c0_i32 : i32, i32
  }
}

</mosaic_0001>

<llo_original>
// kernel: _forward_impl.1
$region0: #{_forward_impl.1}
  #allocation0 [shape = 'u32[]', space=smem, size = 0x4, offset = 0x4, fixed_abs, tag = 'smem constant byte address 0x4 - core index']
  #allocation1 [shape = 'u32[144,128]{1,0:T(1,128)}', space=vmem, size = 0x12000, scoped, tag = 'internal scratch']
  %s0 = inlined_call_operand.hbm [shape: f32[16,320], index: 0, kind: input, shape index: {}]
  %s1 = inlined_call_operand.hbm [shape: bf16[320,256], index: 1, kind: input, shape index: {}]
  %s2 = inlined_call_operand.vmem [shape: f32[1,256], index: 2, kind: input, shape index: {}]
  %s3 = inlined_call_operand.hbm [shape: bf16[256,1152], index: 3, kind: input, shape index: {}]
  %s4 = inlined_call_operand.vmem [shape: f32[1,1152], index: 4, kind: input, shape index: {}]
  %s5 = inlined_call_operand.hbm [shape: f32[16,256], index: 5, kind: output, shape index: {0}]
  %s6 = inlined_call_operand.hbm [shape: f32[16,320], index: 6, kind: output, shape index: {1}]
  %s7 = inlined_call_operand.hbm [shape: f32[16,320], index: 7, kind: output, shape index: {2}]
  %s8 = inlined_call_operand.hbm [shape: f32[16,320], index: 8, kind: output, shape index: {3}]
  %9 = xla_tuple %s5, %s6, %s7, %s8
  %s10 = sld [smem:[#allocation0]]
  $region66: #{_forward_impl.1} parent=0
    _
  %s12 = ssub.s32 1, %s10
  %s13 = scalar_select 0, %s12, %s10
  $region1: #{_forward_impl.1} parent=0
    #allocation2 [shape = 'u8[24576]{0}', space=vmem, size = 0x6000, scoped, tag = 'input window, operand 0, single buffered']
    #allocation3 [shape = 's32[1]{0}', space=sflag, size = 0x4, scoped, tag = 'scoped memory for _forward_impl.1']
    #allocation4 [shape = 's32[1]{0}', space=sflag, size = 0x4, scoped, tag = 'scoped memory for _forward_impl.1']
    #allocation5 [shape = 'u8[163840]{0}', space=vmem, size = 0x28000, scoped, tag = 'input window, operand 1, single buffered']
    #allocation6 [shape = 's32[1]{0}', space=sflag, size = 0x4, scoped, tag = 'scoped memory for _forward_impl.1']
    #allocation7 [shape = 'u8[589824]{0}', space=vmem, size = 0x90000, scoped, tag = 'input window, operand 3, single buffered']
    #allocation8 [shape = 'u8[16384]{0}', space=vmem, size = 0x4000, scoped, tag = 'output window, operand 0, single buffered']
    #allocation9 [shape = 'u8[24576]{0}', space=vmem, size = 0x6000, scoped, tag = 'output window, operand 1, single buffered']
    #allocation10 [shape = 's32[1]{0}', space=sflag, size = 0x4, scoped, tag = 'scoped memory for _forward_impl.1']
    #allocation11 [shape = 'u8[24576]{0}', space=vmem, size = 0x6000, scoped, tag = 'output window, operand 2, single buffered']
    #allocation12 [shape = 'u8[24576]{0}', space=vmem, size = 0x6000, scoped, tag = 'output window, operand 3, single buffered']
    #allocation13 [shape = 's32[1]{0}', space=sflag, size = 0x4, scoped, tag = 'scoped memory for _forward_impl.1']
    %14 = vsyncpa [#allocation3], 0
    %15 = vsyncpa [#allocation6], 0
    %16 = vsyncpa [#allocation4], 0
    %17 = vsyncpa [#allocation10], 0
    %18 = vsyncpa [#allocation13], 0
    // Predicated region
    $region2: #{_forward_impl.1} parent=1 // pred_check
      _
    $region3: #{_forward_impl.1} parent=1 // pred_check_branch
      %20 = sbr.rel (0) target = $region5
    $region4: #{_forward_impl.1} parent=1 // pred_region
      %s22 = ssub.s32 768, 768
      %23 = vsyncadd [#allocation3], %s22
      %s24 = sshll.u32 [#allocation2], 4
      %s25 = int_to_ptr.vmem [resolvable:$true] %s24
      %30 = dma.hbm_to_vmem [thread:$0]  %s0, 768, %s25, [#allocation3], 384, 384, 24
    $region5: #{_forward_impl.1} parent=1 // pred_fallthru
      _
    // Predicated region
    $region6: #{_forward_impl.1} parent=1 // pred_check
      _
    $region7: #{_forward_impl.1} parent=1 // pred_check_branch
      %32 = sbr.rel (0) target = $region9
    $region8: #{_forward_impl.1} parent=1 // pred_region
      %s34 = ssub.s32 5120, 5120
      %35 = vsyncadd [#allocation6], %s34
      %s36 = sshll.u32 [#allocation5], 4
      %s37 = int_to_ptr.vmem [resolvable:$true] %s36
      %42 = dma.hbm_to_vmem [thread:$0]  %s1, 5120, %s37, [#allocation6], 128, 128, 8
    $region9: #{_forward_impl.1} parent=1 // pred_fallthru
      _
    // Predicated region
    $region10: #{_forward_impl.1} parent=1 // pred_check
      _
    $region11: #{_forward_impl.1} parent=1 // pred_check_branch
      %44 = sbr.rel (0) target = $region13
    $region12: #{_forward_impl.1} parent=1 // pred_region
      _
    $region13: #{_forward_impl.1} parent=1 // pred_fallthru
      _
    // Predicated region
    $region14: #{_forward_impl.1} parent=1 // pred_check
      _
    $region15: #{_forward_impl.1} parent=1 // pred_check_branch
      %46 = sbr.rel (0) target = $region17
    $region16: #{_forward_impl.1} parent=1 // pred_region
      %s48 = ssub.s32 18432, 18432
      %49 = vsyncadd [#allocation6], %s48
      %s50 = sshll.u32 [#allocation7], 4
      %s51 = int_to_ptr.vmem [resolvable:$true] %s50
      %56 = dma.hbm_to_vmem [thread:$0]  %s3, 18432, %s51, [#allocation6], 576, 576, 36
    $region17: #{_forward_impl.1} parent=1 // pred_fallthru
      _
    // Predicated region
    $region18: #{_forward_impl.1} parent=1 // pred_check
      _
    $region19: #{_forward_impl.1} parent=1 // pred_check_branch
      %58 = sbr.rel (0) target = $region21
    $region20: #{_forward_impl.1} parent=1 // pred_region
      _
    $region21: #{_forward_impl.1} parent=1 // pred_fallthru
      _
    // Predicated region
    $region22: #{_forward_impl.1} parent=1 // pred_check
      _
    $region23: #{_forward_impl.1} parent=1 // pred_check_branch
      %60 = sbr.rel (0) target = $region25
    $region24: #{_forward_impl.1} parent=1 // pred_region
      %61 = dma.done [#allocation3], 768
    $region25: #{_forward_impl.1} parent=1 // pred_fallthru
      _
    // Predicated region
    $region26: #{_forward_impl.1} parent=1 // pred_check
      _
    $region27: #{_forward_impl.1} parent=1 // pred_check_branch
      %63 = sbr.rel (0) target = $region29
    $region28: #{_forward_impl.1} parent=1 // pred_region
      %64 = dma.done [#allocation6], 5120
    $region29: #{_forward_impl.1} parent=1 // pred_fallthru
      _
    // Predicated region
    $region30: #{_forward_impl.1} parent=1 // pred_check
      _
    $region31: #{_forward_impl.1} parent=1 // pred_check_branch
      %66 = sbr.rel (0) target = $region33
    $region32: #{_forward_impl.1} parent=1 // pred_region
      %67 = dma.done [#allocation6], 18432
    $region33: #{_forward_impl.1} parent=1 // pred_fallthru
      _
    %v69 = vld [vmem:[#allocation2] sm:$0xff]
    %v70 = vld [vmem:[#allocation2 + $0x8] sm:$0xff]
    %v71 = vld [vmem:[#allocation2 + $0x10] sm:$0xff]
    %v72 = vld [vmem:[#allocation2 + $0x18] sm:$0xff]
    %v73 = vld [vmem:[#allocation2 + $0x20] sm:$0xff]
    %v74 = vld [vmem:[#allocation2 + $0x28] sm:$0xff]
    %v75 = vpack.c.bf16 %v72, %v69
    %v76 = vpack.c.bf16 %v73, %v70
    %v77 = vpack.c.bf16 %v74, %v71
    %v78 = vld [vmem:[#allocation5] sm:$0xff]
    %v79 = vld [vmem:[#allocation5 + $0x8] sm:$0xff]
    %v80 = vld [vmem:[#allocation5 + $0x10] sm:$0xff]
    %v81 = vld [vmem:[#allocation5 + $0x18] sm:$0xff]
    %v82 = vld [vmem:[#allocation5 + $0x20] sm:$0xff]
    %v83 = vld [vmem:[#allocation5 + $0x28] sm:$0xff]
    %v84 = vld [vmem:[#allocation5 + $0x30] sm:$0xff]
    %v85 = vld [vmem:[#allocation5 + $0x38] sm:$0xff]
    %v86 = vld [vmem:[#allocation5 + $0x40] sm:$0xff]
    %v87 = vld [vmem:[#allocation5 + $0x48] sm:$0xff]
    %v88 = vld [vmem:[#allocation5 + $0x50] sm:$0xff]
    %v89 = vld [vmem:[#allocation5 + $0x58] sm:$0xff]
    %v90 = vld [vmem:[#allocation5 + $0x60] sm:$0xff]
    %v91 = vld [vmem:[#allocation5 + $0x68] sm:$0xff]
    %v92 = vld [vmem:[#allocation5 + $0x70] sm:$0xff]
    %v93 = vld [vmem:[#allocation5 + $0x78] sm:$0xff]
    %v94 = vld [vmem:[#allocation5 + $0x80] sm:$0xff]
    %v95 = vld [vmem:[#allocation5 + $0x88] sm:$0xff]
    %v96 = vld [vmem:[#allocation5 + $0x90] sm:$0xff]
    %v97 = vld [vmem:[#allocation5 + $0x98] sm:$0xff]
    %v98 = vld [vmem:[#allocation5 + $0xa0] sm:$0xff]
    %v99 = vld [vmem:[#allocation5 + $0xa8] sm:$0xff]
    %v100 = vld [vmem:[#allocation5 + $0xb0] sm:$0xff]
    %v101 = vld [vmem:[#allocation5 + $0xb8] sm:$0xff]
    %v102 = vld [vmem:[#allocation5 + $0xc0] sm:$0xff]
    %v103 = vld [vmem:[#allocation5 + $0xc8] sm:$0xff]
    %v104 = vld [vmem:[#allocation5 + $0xd0] sm:$0xff]
    %v105 = vld [vmem:[#allocation5 + $0xd8] sm:$0xff]
    %v106 = vld [vmem:[#allocation5 + $0xe0] sm:$0xff]
    %v107 = vld [vmem:[#allocation5 + $0xe8] sm:$0xff]
    %v108 = vld [vmem:[#allocation5 + $0xf0] sm:$0xff]
    %v109 = vld [vmem:[#allocation5 + $0xf8] sm:$0xff]
    %v110 = vld [vmem:[#allocation5 + $0x100] sm:$0xff]
    %v111 = vld [vmem:[#allocation5 + $0x108] sm:$0xff]
    %v112 = vld [vmem:[#allocation5 + $0x110] sm:$0xff]
    %v113 = vld [vmem:[#allocation5 + $0x118] sm:$0xff]
    %v114 = vld [vmem:[#allocation5 + $0x120] sm:$0xff]
    %v115 = vld [vmem:[#allocation5 + $0x128] sm:$0xff]
    %v116 = vld [vmem:[#allocation5 + $0x130] sm:$0xff]
    %v117 = vld [vmem:[#allocation5 + $0x138] sm:$0xff]
    %v118 = vld [vmem:[%s2] sm:$0x3]
    %v120 = vlaneseq
    %v121 = vshrl.u32 %v120, 7
    %v122 = vsub.s32 0, %v121
    %v123 = vrot.slane %v118, %v122
    %v124 = vlaneseq
    %v125 = vshrl.u32 %v124, 7
    %v126 = vsub.s32 1, %v125
    %v127 = vrot.slane %v118, %v126
    %v170 = vunpack.c.l.b16 %v78
    %v171 = vunpack.c.h.b16 %v78
    %v172 = vunpack.c.l.b16 %v79
    %v173 = vunpack.c.h.b16 %v79
    %v174 = vunpack.c.l.b16 %v80
    %v175 = vunpack.c.h.b16 %v80
    %v176 = vunpack.c.l.b16 %v81
    %v177 = vunpack.c.h.b16 %v81
    %v178 = vunpack.c.l.b16 %v82
    %v179 = vunpack.c.h.b16 %v82
    %v180 = vunpack.c.l.b16 %v83
    %v181 = vunpack.c.h.b16 %v83
    %v182 = vunpack.c.l.b16 %v84
    %v183 = vunpack.c.h.b16 %v84
    %v184 = vunpack.c.l.b16 %v85
    %v185 = vunpack.c.h.b16 %v85
    %v186 = vunpack.c.l.b16 %v86
    %v187 = vunpack.c.h.b16 %v86
    %v188 = vunpack.c.l.b16 %v87
    %v189 = vunpack.c.h.b16 %v87
    %v190 = vunpack.c.l.b16 %v88
    %v191 = vunpack.c.h.b16 %v88
    %v192 = vunpack.c.l.b16 %v89
    %v193 = vunpack.c.h.b16 %v89
    %v194 = vunpack.c.l.b16 %v90
    %v195 = vunpack.c.h.b16 %v90
    %v196 = vunpack.c.l.b16 %v91
    %v197 = vunpack.c.h.b16 %v91
    %v198 = vunpack.c.l.b16 %v92
    %v199 = vunpack.c.h.b16 %v92
    %v200 = vunpack.c.l.b16 %v93
    %v201 = vunpack.c.h.b16 %v93
    %v202 = vunpack.c.l.b16 %v94
    %v203 = vunpack.c.h.b16 %v94
    %v204 = vunpack.c.l.b16 %v95
    %v205 = vunpack.c.h.b16 %v95
    %v206 = vunpack.c.l.b16 %v96
    %v207 = vunpack.c.h.b16 %v96
    %v208 = vunpack.c.l.b16 %v97
    %v209 = vunpack.c.h.b16 %v97
    %v210 = vunpack.c.l.b16 %v98
    %v211 = vunpack.c.h.b16 %v98
    %v212 = vunpack.c.l.b16 %v99
    %v213 = vunpack.c.h.b16 %v99
    %v214 = vunpack.c.l.b16 %v100
    %v215 = vunpack.c.h.b16 %v100
    %v216 = vunpack.c.l.b16 %v101
    %v217 = vunpack.c.h.b16 %v101
    %v218 = vunpack.c.l.b16 %v102
    %v219 = vunpack.c.h.b16 %v102
    %v220 = vunpack.c.l.b16 %v103
    %v221 = vunpack.c.h.b16 %v103
    %v222 = vunpack.c.l.b16 %v104
    %v223 = vunpack.c.h.b16 %v104
    %v224 = vunpack.c.l.b16 %v105
    %v225 = vunpack.c.h.b16 %v105
    %v226 = vunpack.c.l.b16 %v106
    %v227 = vunpack.c.h.b16 %v106
    %v228 = vunpack.c.l.b16 %v107
    %v229 = vunpack.c.h.b16 %v107
    %v230 = vunpack.c.l.b16 %v108
    %v231 = vunpack.c.h.b16 %v108
    %v232 = vunpack.c.l.b16 %v109
    %v233 = vunpack.c.h.b16 %v109
    %v234 = vunpack.c.l.b16 %v110
    %v235 = vunpack.c.h.b16 %v110
    %v236 = vunpack.c.l.b16 %v111
    %v237 = vunpack.c.h.b16 %v111
    %v238 = vunpack.c.l.b16 %v112
    %v239 = vunpack.c.h.b16 %v112
    %v240 = vunpack.c.l.b16 %v113
    %v241 = vunpack.c.h.b16 %v113
    %v242 = vunpack.c.l.b16 %v114
    %v243 = vunpack.c.h.b16 %v114
    %v244 = vunpack.c.l.b16 %v115
    %v245 = vunpack.c.h.b16 %v115
    %v246 = vunpack.c.l.b16 %v116
    %v247 = vunpack.c.h.b16 %v116
    %v248 = vunpack.c.l.b16 %v117
    %v249 = vunpack.c.h.b16 %v117
    %v250 = vpack.c.b16 %v172, %v170
    %v251 = vpack.c.b16 %v173, %v171
    %v252 = vpack.c.b16 %v176, %v174
    %v253 = vpack.c.b16 %v177, %v175
    %v254 = vpack.c.b16 %v180, %v178
    %v255 = vpack.c.b16 %v181, %v179
    %v256 = vpack.c.b16 %v184, %v182
    %v257 = vpack.c.b16 %v185, %v183
    %v258 = vpack.c.b16 %v188, %v186
    %v259 = vpack.c.b16 %v189, %v187
    %v260 = vpack.c.b16 %v192, %v190
    %v261 = vpack.c.b16 %v193, %v191
    %v262 = vpack.c.b16 %v196, %v194
    %v263 = vpack.c.b16 %v197, %v195
    %v264 = vpack.c.b16 %v200, %v198
    %v265 = vpack.c.b16 %v201, %v199
    %v266 = vpack.c.b16 %v204, %v202
    %v267 = vpack.c.b16 %v205, %v203
    %v268 = vpack.c.b16 %v208, %v206
    %v269 = vpack.c.b16 %v209, %v207
    %v270 = vpack.c.b16 %v212, %v210
    %v271 = vpack.c.b16 %v213, %v211
    %v272 = vpack.c.b16 %v216, %v214
    %v273 = vpack.c.b16 %v217, %v215
    %v274 = vpack.c.b16 %v220, %v218
    %v275 = vpack.c.b16 %v221, %v219
    %v276 = vpack.c.b16 %v224, %v222
    %v277 = vpack.c.b16 %v225, %v223
    %v278 = vpack.c.b16 %v228, %v226
    %v279 = vpack.c.b16 %v229, %v227
    %v280 = vpack.c.b16 %v232, %v230
    %v281 = vpack.c.b16 %v233, %v231
    %v282 = vpack.c.b16 %v236, %v234
    %v283 = vpack.c.b16 %v237, %v235
    %v284 = vpack.c.b16 %v240, %v238
    %v285 = vpack.c.b16 %v241, %v239
    %v286 = vpack.c.b16 %v244, %v242
    %v287 = vpack.c.b16 %v245, %v243
    %v288 = vpack.c.b16 %v248, %v246
    %v289 = vpack.c.b16 %v249, %v247
    %vm330 = vcmask 523264
    %v332 = vsel %vm330, %v77, 0
    %334 = vmatprep.subr.bf16.mxu0 %v251
    %335 = vmatpush1.bf16.msra.mxu0 %v250
    %336 = vmatprep.subr.bf16.mxu0 %v253
    %337 = vmatpush1.bf16.msra.mxu0 %v252
    %338 = vmatprep.subr.bf16.mxu0 %v255
    %339 = vmatpush1.bf16.msra.mxu0 %v254
    %340 = vmatprep.subr.bf16.mxu0 %v257
    %341 = vmatpush1.bf16.msra.mxu0 %v256
    %342 = vmatprep.subr.bf16.mxu0 %v259
    %343 = vmatpush1.bf16.msra.mxu0 %v258
    %344 = vmatprep.subr.bf16.mxu0 %v261
    %345 = vmatpush1.bf16.msra.mxu0 %v260
    %346 = vmatprep.subr.bf16.mxu0 %v263
    %347 = vmatpush1.bf16.msra.mxu0 %v262
    %348 = vmatprep.subr.bf16.mxu0 %v265
    %349 = vmatpush1.bf16.msra.mxu0 %v264
    %350 = vmatprep.subr.bf16.mxu0 %v267
    %351 = vmatpush1.bf16.msra.mxu0 %v266
    %352 = vmatprep.subr.bf16.mxu0 %v269
    %353 = vmatpush1.bf16.msra.mxu0 %v268
    %354 = vmatprep.subr.bf16.mxu0 %v271
    %355 = vmatpush1.bf16.msra.mxu0 %v270
    %356 = vmatprep.subr.bf16.mxu0 %v273
    %357 = vmatpush1.bf16.msra.mxu0 %v272
    %358 = vmatprep.subr.bf16.mxu0 %v275
    %359 = vmatpush1.bf16.msra.mxu0 %v274
    %360 = vmatprep.subr.bf16.mxu0 %v277
    %361 = vmatpush1.bf16.msra.mxu0 %v276
    %362 = vmatprep.subr.bf16.mxu0 %v279
    %363 = vmatpush1.bf16.msra.mxu0 %v278
    %364 = vmatprep.subr.bf16.mxu0 %v281
    %365 = vmatpush1.bf16.msra.mxu0 %v280
    %366 = vmatprep.mubr.bf16.mxu0 %v76
    %367 = vmatmul.mubr.bf16.gmra.mrb[0].mxu0 %v75
    %v368 = vpop.f32.mrb[0].mxu0
    %v369 = vadd.f32 %v123, %v368
    %v370 = vpop.f32.mrb[0].mxu0
    %v371 = vadd.f32 %v127, %v370
    %v372 = vpop.f32.mrb[0].mxu0
    %v373 = vadd.f32 %v123, %v372
    %v374 = vpop.f32.mrb[0].mxu0
    %v375 = vadd.f32 %v127, %v374
    %376 = vdwg.mxu0
    %377 = vmatprep.subr.bf16.mxu0 %v283
    %378 = vmatpush1.bf16.msra.mxu0 %v282
    %379 = vmatprep.subr.bf16.mxu0 %v285
    %380 = vmatpush1.bf16.msra.mxu0 %v284
    %381 = vmatprep.subr.bf16.mxu0 %v287
    %382 = vmatpush1.bf16.msra.mxu0 %v286
    %383 = vmatprep.subr.bf16.mxu0 %v289
    %384 = vmatpush1.bf16.msra.mxu0 %v288
    %385 = vmatprep.subr.bf16.mxu0 0
    %386 = vmatpush1.bf16.msra.mxu0 0
    %387 = vmatprep.subr.bf16.mxu0 0
    %388 = vmatpush1.bf16.msra.mxu0 0
    %389 = vmatprep.subr.bf16.mxu0 0
    %390 = vmatpush1.bf16.msra.mxu0 0
    %391 = vmatprep.subr.bf16.mxu0 0
    %392 = vmatpush1.bf16.msra.mxu0 0
    %393 = vmatprep.subr.bf16.mxu0 0
    %394 = vmatpush1.bf16.msra.mxu0 0
    %395 = vmatprep.subr.bf16.mxu0 0
    %396 = vmatpush1.bf16.msra.mxu0 0
    %397 = vmatprep.subr.bf16.mxu0 0
    %398 = vmatpush1.bf16.msra.mxu0 0
    %399 = vmatprep.subr.bf16.mxu0 0
    %400 = vmatpush1.bf16.msra.mxu0 0
    %401 = vmatprep.subr.bf16.mxu0 0
    %402 = vmatpush1.bf16.msra.mxu0 0
    %403 = vmatprep.subr.bf16.mxu0 0
    %404 = vmatpush1.bf16.msra.mxu0 0
    %405 = vmatprep.subr.bf16.mxu0 0
    %406 = vmatpush1.bf16.msra.mxu0 0
    %407 = vmatprep.subr.bf16.mxu0 0
    %408 = vmatpush1.bf16.msra.mxu0 0
    %409 = vmatprep.mubr.bf16.mxu0 0
    %410 = vmatmul.mubr.bf16.gmra.mrb[0].mxu0 %v332
    %v411 = vpop.f32.mrb[0].mxu0
    %v412 = vadd.f32 %v369, %v411
    %v413 = vpop.f32.mrb[0].mxu0
    %v414 = vadd.f32 %v371, %v413
    %v415 = vpop.f32.mrb[0].mxu0
    %v416 = vadd.f32 %v373, %v415
    %v417 = vpop.f32.mrb[0].mxu0
    %v418 = vadd.f32 %v375, %v417
    %419 = vdwg.mxu0
    %v420 = vmax.f32 %v412, 0.0
    %v421 = vmax.f32 %v414, 0.0
    %v422 = vmax.f32 %v416, 0.0
    %v423 = vmax.f32 %v418, 0.0
    %424 = vst [vmem:[#allocation8] sm:$0xff] %v420
    %425 = vst [vmem:[#allocation8 + $0x8] sm:$0xff] %v421
    %426 = vst [vmem:[#allocation8 + $0x10] sm:$0xff] %v422
    %427 = vst [vmem:[#allocation8 + $0x18] sm:$0xff] %v423
    %v428 = vpack.c.bf16 %v422, %v420
    %v429 = vpack.c.bf16 %v423, %v421
    %v430 = vld [vmem:[#allocation7] sm:$0xff]
    %v431 = vld [vmem:[#allocation7 + $0x8] sm:$0xff]
    %v432 = vld [vmem:[#allocation7 + $0x10] sm:$0xff]
    %v433 = vld [vmem:[#allocation7 + $0x18] sm:$0xff]
    %v434 = vld [vmem:[#allocation7 + $0x20] sm:$0xf]
    %v435 = vld [vmem:[#allocation7 + $0x24] sm:$0xff]
    %v436 = vld [vmem:[#allocation7 + $0x2c] sm:$0xff]
    %v437 = vld [vmem:[#allocation7 + $0x34] sm:$0xff]
    %v438 = vld [vmem:[#allocation7 + $0x3c] sm:$0xff]
    %v439 = vld [vmem:[#allocation7 + $0x44] sm:$0xf]
    %v440 = vld [vmem:[#allocation7 + $0x48] sm:$0xff]
    %v441 = vld [vmem:[#allocation7 + $0x50] sm:$0xff]
    %v442 = vld [vmem:[#allocation7 + $0x58] sm:$0xff]
    %v443 = vld [vmem:[#allocation7 + $0x60] sm:$0xff]
    %v444 = vld [vmem:[#allocation7 + $0x68] sm:$0xf]
    %v445 = vld [vmem:[#allocation7 + $0x6c] sm:$0xff]
    %v446 = vld [vmem:[#allocation7 + $0x74] sm:$0xff]
    %v447 = vld [vmem:[#allocation7 + $0x7c] sm:$0xff]
    %v448 = vld [vmem:[#allocation7 + $0x84] sm:$0xff]
    %v449 = vld [vmem:[#allocation7 + $0x8c] sm:$0xf]
    %v450 = vld [vmem:[#allocation7 + $0x90] sm:$0xff]
    %v451 = vld [vmem:[#allocation7 + $0x98] sm:$0xff]
    %v452 = vld [vmem:[#allocation7 + $0xa0] sm:$0xff]
    %v453 = vld [vmem:[#allocation7 + $0xa8] sm:$0xff]
    %v454 = vld [vmem:[#allocation7 + $0xb0] sm:$0xf]
    %v455 = vld [vmem:[#allocation7 + $0xb4] sm:$0xff]
    %v456 = vld [vmem:[#allocation7 + $0xbc] sm:$0xff]
    %v457 = vld [vmem:[#allocation7 + $0xc4] sm:$0xff]
    %v458 = vld [vmem:[#allocation7 + $0xcc] sm:$0xff]
    %v459 = vld [vmem:[#allocation7 + $0xd4] sm:$0xf]
    %v460 = vld [vmem:[#allocation7 + $0xd8] sm:$0xff]
    %v461 = vld [vmem:[#allocation7 + $0xe0] sm:$0xff]
    %v462 = vld [vmem:[#allocation7 + $0xe8] sm:$0xff]
    %v463 = vld [vmem:[#allocation7 + $0xf0] sm:$0xff]
    %v464 = vld [vmem:[#allocation7 + $0xf8] sm:$0xf]
    %v465 = vld [vmem:[#allocation7 + $0xfc] sm:$0xff]
    %v466 = vld [vmem:[#allocation7 + $0x104] sm:$0xff]
    %v467 = vld [vmem:[#allocation7 + $0x10c] sm:$0xff]
    %v468 = vld [vmem:[#allocation7 + $0x114] sm:$0xff]
    %v469 = vld [vmem:[#allocation7 + $0x11c] sm:$0xf]
    %v470 = vld [vmem:[#allocation7 + $0x120] sm:$0xff]
    %v471 = vld [vmem:[#allocation7 + $0x128] sm:$0xff]
    %v472 = vld [vmem:[#allocation7 + $0x130] sm:$0xff]
    %v473 = vld [vmem:[#allocation7 + $0x138] sm:$0xff]
    %v474 = vld [vmem:[#allocation7 + $0x140] sm:$0xf]
    %v475 = vld [vmem:[#allocation7 + $0x144] sm:$0xff]
    %v476 = vld [vmem:[#allocation7 + $0x14c] sm:$0xff]
    %v477 = vld [vmem:[#allocation7 + $0x154] sm:$0xff]
    %v478 = vld [vmem:[#allocation7 + $0x15c] sm:$0xff]
    %v479 = vld [vmem:[#allocation7 + $0x164] sm:$0xf]
    %v480 = vld [vmem:[#allocation7 + $0x168] sm:$0xff]
    %v481 = vld [vmem:[#allocation7 + $0x170] sm:$0xff]
    %v482 = vld [vmem:[#allocation7 + $0x178] sm:$0xff]
    %v483 = vld [vmem:[#allocation7 + $0x180] sm:$0xff]
    %v484 = vld [vmem:[#allocation7 + $0x188] sm:$0xf]
    %v485 = vld [vmem:[#allocation7 + $0x18c] sm:$0xff]
    %v486 = vld [vmem:[#allocation7 + $0x194] sm:$0xff]
    %v487 = vld [vmem:[#allocation7 + $0x19c] sm:$0xff]
    %v488 = vld [vmem:[#allocation7 + $0x1a4] sm:$0xff]
    %v489 = vld [vmem:[#allocation7 + $0x1ac] sm:$0xf]
    %v490 = vld [vmem:[#allocation7 + $0x1b0] sm:$0xff]
    %v491 = vld [vmem:[#allocation7 + $0x1b8] sm:$0xff]
    %v492 = vld [vmem:[#allocation7 + $0x1c0] sm:$0xff]
    %v493 = vld [vmem:[#allocation7 + $0x1c8] sm:$0xff]
    %v494 = vld [vmem:[#allocation7 + $0x1d0] sm:$0xf]
    %v495 = vld [vmem:[#allocation7 + $0x1d4] sm:$0xff]
    %v496 = vld [vmem:[#allocation7 + $0x1dc] sm:$0xff]
    %v497 = vld [vmem:[#allocation7 + $0x1e4] sm:$0xff]
    %v498 = vld [vmem:[#allocation7 + $0x1ec] sm:$0xff]
    %v499 = vld [vmem:[#allocation7 + $0x1f4] sm:$0xf]
    %v500 = vld [vmem:[#allocation7 + $0x1f8] sm:$0xff]
    %v501 = vld [vmem:[#allocation7 + $0x200] sm:$0xff]
    %v502 = vld [vmem:[#allocation7 + $0x208] sm:$0xff]
    %v503 = vld [vmem:[#allocation7 + $0x210] sm:$0xff]
    %v504 = vld [vmem:[#allocation7 + $0x218] sm:$0xf]
    %v505 = vld [vmem:[#allocation7 + $0x21c] sm:$0xff]
    %v506 = vld [vmem:[#allocation7 + $0x224] sm:$0xff]
    %v507 = vld [vmem:[#allocation7 + $0x22c] sm:$0xff]
    %v508 = vld [vmem:[#allocation7 + $0x234] sm:$0xff]
    %v509 = vld [vmem:[#allocation7 + $0x23c] sm:$0xf]
    %v510 = vld [vmem:[#allocation7 + $0x240] sm:$0xff]
    %v511 = vld [vmem:[#allocation7 + $0x248] sm:$0xff]
    %v512 = vld [vmem:[#allocation7 + $0x250] sm:$0xff]
    %v513 = vld [vmem:[#allocation7 + $0x258] sm:$0xff]
    %v514 = vld [vmem:[#allocation7 + $0x260] sm:$0xf]
    %v515 = vld [vmem:[#allocation7 + $0x264] sm:$0xff]
    %v516 = vld [vmem:[#allocation7 + $0x26c] sm:$0xff]
    %v517 = vld [vmem:[#allocation7 + $0x274] sm:$0xff]
    %v518 = vld [vmem:[#allocation7 + $0x27c] sm:$0xff]
    %v519 = vld [vmem:[#allocation7 + $0x284] sm:$0xf]
    %v520 = vld [vmem:[#allocation7 + $0x288] sm:$0xff]
    %v521 = vld [vmem:[#allocation7 + $0x290] sm:$0xff]
    %v522 = vld [vmem:[#allocation7 + $0x298] sm:$0xff]
    %v523 = vld [vmem:[#allocation7 + $0x2a0] sm:$0xff]
    %v524 = vld [vmem:[#allocation7 + $0x2a8] sm:$0xf]
    %v525 = vld [vmem:[#allocation7 + $0x2ac] sm:$0xff]
    %v526 = vld [vmem:[#allocation7 + $0x2b4] sm:$0xff]
    %v527 = vld [vmem:[#allocation7 + $0x2bc] sm:$0xff]
    %v528 = vld [vmem:[#allocation7 + $0x2c4] sm:$0xff]
    %v529 = vld [vmem:[#allocation7 + $0x2cc] sm:$0xf]
    %v530 = vld [vmem:[#allocation7 + $0x2d0] sm:$0xff]
    %v531 = vld [vmem:[#allocation7 + $0x2d8] sm:$0xff]
    %v532 = vld [vmem:[#allocation7 + $0x2e0] sm:$0xff]
    %v533 = vld [vmem:[#allocation7 + $0x2e8] sm:$0xff]
    %v534 = vld [vmem:[#allocation7 + $0x2f0] sm:$0xf]
    %v535 = vld [vmem:[#allocation7 + $0x2f4] sm:$0xff]
    %v536 = vld [vmem:[#allocation7 + $0x2fc] sm:$0xff]
    %v537 = vld [vmem:[#allocation7 + $0x304] sm:$0xff]
    %v538 = vld [vmem:[#allocation7 + $0x30c] sm:$0xff]
    %v539 = vld [vmem:[#allocation7 + $0x314] sm:$0xf]
    %v540 = vld [vmem:[#allocation7 + $0x318] sm:$0xff]
    %v541 = vld [vmem:[#allocation7 + $0x320] sm:$0xff]
    %v542 = vld [vmem:[#allocation7 + $0x328] sm:$0xff]
    %v543 = vld [vmem:[#allocation7 + $0x330] sm:$0xff]
    %v544 = vld [vmem:[#allocation7 + $0x338] sm:$0xf]
    %v545 = vld [vmem:[#allocation7 + $0x33c] sm:$0xff]
    %v546 = vld [vmem:[#allocation7 + $0x344] sm:$0xff]
    %v547 = vld [vmem:[#allocation7 + $0x34c] sm:$0xff]
    %v548 = vld [vmem:[#allocation7 + $0x354] sm:$0xff]
    %v549 = vld [vmem:[#allocation7 + $0x35c] sm:$0xf]
    %v550 = vld [vmem:[#allocation7 + $0x360] sm:$0xff]
    %v551 = vld [vmem:[#allocation7 + $0x368] sm:$0xff]
    %v552 = vld [vmem:[#allocation7 + $0x370] sm:$0xff]
    %v553 = vld [vmem:[#allocation7 + $0x378] sm:$0xff]
    %v554 = vld [vmem:[#allocation7 + $0x380] sm:$0xf]
    %v555 = vld [vmem:[#allocation7 + $0x384] sm:$0xff]
    %v556 = vld [vmem:[#allocation7 + $0x38c] sm:$0xff]
    %v557 = vld [vmem:[#allocation7 + $0x394] sm:$0xff]
    %v558 = vld [vmem:[#allocation7 + $0x39c] sm:$0xff]
    %v559 = vld [vmem:[#allocation7 + $0x3a4] sm:$0xf]
    %v560 = vld [vmem:[#allocation7 + $0x3a8] sm:$0xff]
    %v561 = vld [vmem:[#allocation7 + $0x3b0] sm:$0xff]
    %v562 = vld [vmem:[#allocation7 + $0x3b8] sm:$0xff]
    %v563 = vld [vmem:[#allocation7 + $0x3c0] sm:$0xff]
    %v564 = vld [vmem:[#allocation7 + $0x3c8] sm:$0xf]
    %v565 = vld [vmem:[#allocation7 + $0x3cc] sm:$0xff]
    %v566 = vld [vmem:[#allocation7 + $0x3d4] sm:$0xff]
    %v567 = vld [vmem:[#allocation7 + $0x3dc] sm:$0xff]
    %v568 = vld [vmem:[#allocation7 + $0x3e4] sm:$0xff]
    %v569 = vld [vmem:[#allocation7 + $0x3ec] sm:$0xf]
    %v570 = vld [vmem:[#allocation7 + $0x3f0] sm:$0xff]
    %v571 = vld [vmem:[#allocation7 + $0x3f8] sm:$0xff]
    %v572 = vld [vmem:[#allocation7 + $0x400] sm:$0xff]
    %v573 = vld [vmem:[#allocation7 + $0x408] sm:$0xff]
    %v574 = vld [vmem:[#allocation7 + $0x410] sm:$0xf]
    %v575 = vld [vmem:[#allocation7 + $0x414] sm:$0xff]
    %v576 = vld [vmem:[#allocation7 + $0x41c] sm:$0xff]
    %v577 = vld [vmem:[#allocation7 + $0x424] sm:$0xff]
    %v578 = vld [vmem:[#allocation7 + $0x42c] sm:$0xff]
    %v579 = vld [vmem:[#allocation7 + $0x434] sm:$0xf]
    %v580 = vld [vmem:[#allocation7 + $0x438] sm:$0xff]
    %v581 = vld [vmem:[#allocation7 + $0x440] sm:$0xff]
    %v582 = vld [vmem:[#allocation7 + $0x448] sm:$0xff]
    %v583 = vld [vmem:[#allocation7 + $0x450] sm:$0xff]
    %v584 = vld [vmem:[#allocation7 + $0x458] sm:$0xf]
    %v585 = vld [vmem:[#allocation7 + $0x45c] sm:$0xff]
    %v586 = vld [vmem:[#allocation7 + $0x464] sm:$0xff]
    %v587 = vld [vmem:[#allocation7 + $0x46c] sm:$0xff]
    %v588 = vld [vmem:[#allocation7 + $0x474] sm:$0xff]
    %v589 = vld [vmem:[#allocation7 + $0x47c] sm:$0xf]
    %v590 = vld [vmem:[%s4] sm:$0xff]
    %v591 = vld [vmem:[%s4 + $0x8] sm:$0x1]
    %v594 = vlaneseq
    %v595 = vshrl.u32 %v594, 7
    %v596 = vsub.s32 0, %v595
    %v597 = vrot.slane %v590, %v596
    %v598 = vlaneseq
    %v599 = vshrl.u32 %v598, 7
    %v600 = vsub.s32 1, %v599
    %v601 = vrot.slane %v590, %v600
    %v602 = vlaneseq
    %v603 = vshrl.u32 %v602, 7
    %v604 = vsub.s32 2, %v603
    %v605 = vrot.slane %v590, %v604
    %v606 = vlaneseq
    %v607 = vshrl.u32 %v606, 7
    %v608 = vsub.s32 3, %v607
    %v609 = vrot.slane %v590, %v608
    %v610 = vlaneseq
    %v611 = vshrl.u32 %v610, 7
    %v612 = vsub.s32 4, %v611
    %v613 = vrot.slane %v590, %v612
    %v614 = vlaneseq
    %v615 = vshrl.u32 %v614, 7
    %v616 = vsub.s32 5, %v615
    %v617 = vrot.slane %v590, %v616
    %v618 = vlaneseq
    %v619 = vshrl.u32 %v618, 7
    %v620 = vsub.s32 6, %v619
    %v621 = vrot.slane %v590, %v620
    %v622 = vlaneseq
    %v623 = vshrl.u32 %v622, 7
    %v624 = vsub.s32 7, %v623
    %v625 = vrot.slane %v590, %v624
    %v626 = vlaneseq
    %v627 = vshrl.u32 %v626, 7
    %v628 = vsub.s32 0, %v627
    %v629 = vrot.slane %v591, %v628
    %v799 = vunpack.c.l.b16 %v430
    %v800 = vunpack.c.h.b16 %v430
    %v801 = vunpack.c.l.b16 %v431
    %v802 = vunpack.c.h.b16 %v431
    %v803 = vunpack.c.l.b16 %v432
    %v804 = vunpack.c.h.b16 %v432
    %v805 = vunpack.c.l.b16 %v433
    %v806 = vunpack.c.h.b16 %v433
    %v807 = vunpack.c.l.b16 %v434
    %v808 = vunpack.c.l.b16 %v435
    %v809 = vunpack.c.h.b16 %v435
    %v810 = vunpack.c.l.b16 %v436
    %v811 = vunpack.c.h.b16 %v436
    %v812 = vunpack.c.l.b16 %v437
    %v813 = vunpack.c.h.b16 %v437
    %v814 = vunpack.c.l.b16 %v438
    %v815 = vunpack.c.h.b16 %v438
    %v816 = vunpack.c.l.b16 %v439
    %v817 = vunpack.c.l.b16 %v440
    %v818 = vunpack.c.h.b16 %v440
    %v819 = vunpack.c.l.b16 %v441
    %v820 = vunpack.c.h.b16 %v441
    %v821 = vunpack.c.l.b16 %v442
    %v822 = vunpack.c.h.b16 %v442
    %v823 = vunpack.c.l.b16 %v443
    %v824 = vunpack.c.h.b16 %v443
    %v825 = vunpack.c.l.b16 %v444
    %v826 = vunpack.c.l.b16 %v445
    %v827 = vunpack.c.h.b16 %v445
    %v828 = vunpack.c.l.b16 %v446
    %v829 = vunpack.c.h.b16 %v446
    %v830 = vunpack.c.l.b16 %v447
    %v831 = vunpack.c.h.b16 %v447
    %v832 = vunpack.c.l.b16 %v448
    %v833 = vunpack.c.h.b16 %v448
    %v834 = vunpack.c.l.b16 %v449
    %v835 = vunpack.c.l.b16 %v450
    %v836 = vunpack.c.h.b16 %v450
    %v837 = vunpack.c.l.b16 %v451
    %v838 = vunpack.c.h.b16 %v451
    %v839 = vunpack.c.l.b16 %v452
    %v840 = vunpack.c.h.b16 %v452
    %v841 = vunpack.c.l.b16 %v453
    %v842 = vunpack.c.h.b16 %v453
    %v843 = vunpack.c.l.b16 %v454
    %v844 = vunpack.c.l.b16 %v455
    %v845 = vunpack.c.h.b16 %v455
    %v846 = vunpack.c.l.b16 %v456
    %v847 = vunpack.c.h.b16 %v456
    %v848 = vunpack.c.l.b16 %v457
    %v849 = vunpack.c.h.b16 %v457
    %v850 = vunpack.c.l.b16 %v458
    %v851 = vunpack.c.h.b16 %v458
    %v852 = vunpack.c.l.b16 %v459
    %v853 = vunpack.c.l.b16 %v460
    %v854 = vunpack.c.h.b16 %v460
    %v855 = vunpack.c.l.b16 %v461
    %v856 = vunpack.c.h.b16 %v461
    %v857 = vunpack.c.l.b16 %v462
    %v858 = vunpack.c.h.b16 %v462
    %v859 = vunpack.c.l.b16 %v463
    %v860 = vunpack.c.h.b16 %v463
    %v861 = vunpack.c.l.b16 %v464
    %v862 = vunpack.c.l.b16 %v465
    %v863 = vunpack.c.h.b16 %v465
    %v864 = vunpack.c.l.b16 %v466
    %v865 = vunpack.c.h.b16 %v466
    %v866 = vunpack.c.l.b16 %v467
    %v867 = vunpack.c.h.b16 %v467
    %v868 = vunpack.c.l.b16 %v468
    %v869 = vunpack.c.h.b16 %v468
    %v870 = vunpack.c.l.b16 %v469
    %v871 = vunpack.c.l.b16 %v470
    %v872 = vunpack.c.h.b16 %v470
    %v873 = vunpack.c.l.b16 %v471
    %v874 = vunpack.c.h.b16 %v471
    %v875 = vunpack.c.l.b16 %v472
    %v876 = vunpack.c.h.b16 %v472
    %v877 = vunpack.c.l.b16 %v473
    %v878 = vunpack.c.h.b16 %v473
    %v879 = vunpack.c.l.b16 %v474
    %v880 = vunpack.c.l.b16 %v475
    %v881 = vunpack.c.h.b16 %v475
    %v882 = vunpack.c.l.b16 %v476
    %v883 = vunpack.c.h.b16 %v476
    %v884 = vunpack.c.l.b16 %v477
    %v885 = vunpack.c.h.b16 %v477
    %v886 = vunpack.c.l.b16 %v478
    %v887 = vunpack.c.h.b16 %v478
    %v888 = vunpack.c.l.b16 %v479
    %v889 = vunpack.c.l.b16 %v480
    %v890 = vunpack.c.h.b16 %v480
    %v891 = vunpack.c.l.b16 %v481
    %v892 = vunpack.c.h.b16 %v481
    %v893 = vunpack.c.l.b16 %v482
    %v894 = vunpack.c.h.b16 %v482
    %v895 = vunpack.c.l.b16 %v483
    %v896 = vunpack.c.h.b16 %v483
    %v897 = vunpack.c.l.b16 %v484
    %v898 = vunpack.c.l.b16 %v485
    %v899 = vunpack.c.h.b16 %v485
    %v900 = vunpack.c.l.b16 %v486
    %v901 = vunpack.c.h.b16 %v486
    %v902 = vunpack.c.l.b16 %v487
    %v903 = vunpack.c.h.b16 %v487
    %v904 = vunpack.c.l.b16 %v488
    %v905 = vunpack.c.h.b16 %v488
    %v906 = vunpack.c.l.b16 %v489
    %v907 = vunpack.c.l.b16 %v490
    %v908 = vunpack.c.h.b16 %v490
    %v909 = vunpack.c.l.b16 %v491
    %v910 = vunpack.c.h.b16 %v491
    %v911 = vunpack.c.l.b16 %v492
    %v912 = vunpack.c.h.b16 %v492
    %v913 = vunpack.c.l.b16 %v493
    %v914 = vunpack.c.h.b16 %v493
    %v915 = vunpack.c.l.b16 %v494
    %v916 = vunpack.c.l.b16 %v495
    %v917 = vunpack.c.h.b16 %v495
    %v918 = vunpack.c.l.b16 %v496
    %v919 = vunpack.c.h.b16 %v496
    %v920 = vunpack.c.l.b16 %v497
    %v921 = vunpack.c.h.b16 %v497
    %v922 = vunpack.c.l.b16 %v498
    %v923 = vunpack.c.h.b16 %v498
    %v924 = vunpack.c.l.b16 %v499
    %v925 = vunpack.c.l.b16 %v500
    %v926 = vunpack.c.h.b16 %v500
    %v927 = vunpack.c.l.b16 %v501
    %v928 = vunpack.c.h.b16 %v501
    %v929 = vunpack.c.l.b16 %v502
    %v930 = vunpack.c.h.b16 %v502
    %v931 = vunpack.c.l.b16 %v503
    %v932 = vunpack.c.h.b16 %v503
    %v933 = vunpack.c.l.b16 %v504
    %v934 = vunpack.c.l.b16 %v505
    %v935 = vunpack.c.h.b16 %v505
    %v936 = vunpack.c.l.b16 %v506
    %v937 = vunpack.c.h.b16 %v506
    %v938 = vunpack.c.l.b16 %v507
    %v939 = vunpack.c.h.b16 %v507
    %v940 = vunpack.c.l.b16 %v508
    %v941 = vunpack.c.h.b16 %v508
    %v942 = vunpack.c.l.b16 %v509
    %v943 = vunpack.c.l.b16 %v510
    %v944 = vunpack.c.h.b16 %v510
    %v945 = vunpack.c.l.b16 %v511
    %v946 = vunpack.c.h.b16 %v511
    %v947 = vunpack.c.l.b16 %v512
    %v948 = vunpack.c.h.b16 %v512
    %v949 = vunpack.c.l.b16 %v513
    %v950 = vunpack.c.h.b16 %v513
    %v951 = vunpack.c.l.b16 %v514
    %v952 = vunpack.c.l.b16 %v515
    %v953 = vunpack.c.h.b16 %v515
    %v954 = vunpack.c.l.b16 %v516
    %v955 = vunpack.c.h.b16 %v516
    %v956 = vunpack.c.l.b16 %v517
    %v957 = vunpack.c.h.b16 %v517
    %v958 = vunpack.c.l.b16 %v518
    %v959 = vunpack.c.h.b16 %v518
    %v960 = vunpack.c.l.b16 %v519
    %v961 = vunpack.c.l.b16 %v520
    %v962 = vunpack.c.h.b16 %v520
    %v963 = vunpack.c.l.b16 %v521
    %v964 = vunpack.c.h.b16 %v521
    %v965 = vunpack.c.l.b16 %v522
    %v966 = vunpack.c.h.b16 %v522
    %v967 = vunpack.c.l.b16 %v523
    %v968 = vunpack.c.h.b16 %v523
    %v969 = vunpack.c.l.b16 %v524
    %v970 = vunpack.c.l.b16 %v525
    %v971 = vunpack.c.h.b16 %v525
    %v972 = vunpack.c.l.b16 %v526
    %v973 = vunpack.c.h.b16 %v526
    %v974 = vunpack.c.l.b16 %v527
    %v975 = vunpack.c.h.b16 %v527
    %v976 = vunpack.c.l.b16 %v528
    %v977 = vunpack.c.h.b16 %v528
    %v978 = vunpack.c.l.b16 %v529
    %v979 = vunpack.c.l.b16 %v530
    %v980 = vunpack.c.h.b16 %v530
    %v981 = vunpack.c.l.b16 %v531
    %v982 = vunpack.c.h.b16 %v531
    %v983 = vunpack.c.l.b16 %v532
    %v984 = vunpack.c.h.b16 %v532
    %v985 = vunpack.c.l.b16 %v533
    %v986 = vunpack.c.h.b16 %v533
    %v987 = vunpack.c.l.b16 %v534
    %v988 = vunpack.c.l.b16 %v535
    %v989 = vunpack.c.h.b16 %v535
    %v990 = vunpack.c.l.b16 %v536
    %v991 = vunpack.c.h.b16 %v536
    %v992 = vunpack.c.l.b16 %v537
    %v993 = vunpack.c.h.b16 %v537
    %v994 = vunpack.c.l.b16 %v538
    %v995 = vunpack.c.h.b16 %v538
    %v996 = vunpack.c.l.b16 %v539
    %v997 = vunpack.c.l.b16 %v540
    %v998 = vunpack.c.h.b16 %v540
    %v999 = vunpack.c.l.b16 %v541
    %v1000 = vunpack.c.h.b16 %v541
    %v1001 = vunpack.c.l.b16 %v542
    %v1002 = vunpack.c.h.b16 %v542
    %v1003 = vunpack.c.l.b16 %v543
    %v1004 = vunpack.c.h.b16 %v543
    %v1005 = vunpack.c.l.b16 %v544
    %v1006 = vunpack.c.l.b16 %v545
    %v1007 = vunpack.c.h.b16 %v545
    %v1008 = vunpack.c.l.b16 %v546
    %v1009 = vunpack.c.h.b16 %v546
    %v1010 = vunpack.c.l.b16 %v547
    %v1011 = vunpack.c.h.b16 %v547
    %v1012 = vunpack.c.l.b16 %v548
    %v1013 = vunpack.c.h.b16 %v548
    %v1014 = vunpack.c.l.b16 %v549
    %v1015 = vunpack.c.l.b16 %v550
    %v1016 = vunpack.c.h.b16 %v550
    %v1017 = vunpack.c.l.b16 %v551
    %v1018 = vunpack.c.h.b16 %v551
    %v1019 = vunpack.c.l.b16 %v552
    %v1020 = vunpack.c.h.b16 %v552
    %v1021 = vunpack.c.l.b16 %v553
    %v1022 = vunpack.c.h.b16 %v553
    %v1023 = vunpack.c.l.b16 %v554
    %v1024 = vunpack.c.l.b16 %v555
    %v1025 = vunpack.c.h.b16 %v555
    %v1026 = vunpack.c.l.b16 %v556
    %v1027 = vunpack.c.h.b16 %v556
    %v1028 = vunpack.c.l.b16 %v557
    %v1029 = vunpack.c.h.b16 %v557
    %v1030 = vunpack.c.l.b16 %v558
    %v1031 = vunpack.c.h.b16 %v558
    %v1032 = vunpack.c.l.b16 %v559
    %v1033 = vunpack.c.l.b16 %v560
    %v1034 = vunpack.c.h.b16 %v560
    %v1035 = vunpack.c.l.b16 %v561
    %v1036 = vunpack.c.h.b16 %v561
    %v1037 = vunpack.c.l.b16 %v562
    %v1038 = vunpack.c.h.b16 %v562
    %v1039 = vunpack.c.l.b16 %v563
    %v1040 = vunpack.c.h.b16 %v563
    %v1041 = vunpack.c.l.b16 %v564
    %v1042 = vunpack.c.l.b16 %v565
    %v1043 = vunpack.c.h.b16 %v565
    %v1044 = vunpack.c.l.b16 %v566
    %v1045 = vunpack.c.h.b16 %v566
    %v1046 = vunpack.c.l.b16 %v567
    %v1047 = vunpack.c.h.b16 %v567
    %v1048 = vunpack.c.l.b16 %v568
    %v1049 = vunpack.c.h.b16 %v568
    %v1050 = vunpack.c.l.b16 %v569
    %v1051 = vunpack.c.l.b16 %v570
    %v1052 = vunpack.c.h.b16 %v570
    %v1053 = vunpack.c.l.b16 %v571
    %v1054 = vunpack.c.h.b16 %v571
    %v1055 = vunpack.c.l.b16 %v572
    %v1056 = vunpack.c.h.b16 %v572
    %v1057 = vunpack.c.l.b16 %v573
    %v1058 = vunpack.c.h.b16 %v573
    %v1059 = vunpack.c.l.b16 %v574
    %v1060 = vunpack.c.l.b16 %v575
    %v1061 = vunpack.c.h.b16 %v575
    %v1062 = vunpack.c.l.b16 %v576
    %v1063 = vunpack.c.h.b16 %v576
    %v1064 = vunpack.c.l.b16 %v577
    %v1065 = vunpack.c.h.b16 %v577
    %v1066 = vunpack.c.l.b16 %v578
    %v1067 = vunpack.c.h.b16 %v578
    %v1068 = vunpack.c.l.b16 %v579
    %v1069 = vunpack.c.l.b16 %v580
    %v1070 = vunpack.c.h.b16 %v580
    %v1071 = vunpack.c.l.b16 %v581
    %v1072 = vunpack.c.h.b16 %v581
    %v1073 = vunpack.c.l.b16 %v582
    %v1074 = vunpack.c.h.b16 %v582
    %v1075 = vunpack.c.l.b16 %v583
    %v1076 = vunpack.c.h.b16 %v583
    %v1077 = vunpack.c.l.b16 %v584
    %v1078 = vunpack.c.l.b16 %v585
    %v1079 = vunpack.c.h.b16 %v585
    %v1080 = vunpack.c.l.b16 %v586
    %v1081 = vunpack.c.h.b16 %v586
    %v1082 = vunpack.c.l.b16 %v587
    %v1083 = vunpack.c.h.b16 %v587
    %v1084 = vunpack.c.l.b16 %v588
    %v1085 = vunpack.c.h.b16 %v588
    %v1086 = vunpack.c.l.b16 %v589
    %v1087 = vpack.c.b16 %v808, %v799
    %v1088 = vpack.c.b16 %v809, %v800
    %v1089 = vpack.c.b16 %v810, %v801
    %v1090 = vpack.c.b16 %v811, %v802
    %v1091 = vpack.c.b16 %v812, %v803
    %v1092 = vpack.c.b16 %v813, %v804
    %v1093 = vpack.c.b16 %v814, %v805
    %v1094 = vpack.c.b16 %v815, %v806
    %v1095 = vpack.c.b16 %v816, %v807
    %v1096 = vpack.c.b16 %v826, %v817
    %v1097 = vpack.c.b16 %v827, %v818
    %v1098 = vpack.c.b16 %v828, %v819
    %v1099 = vpack.c.b16 %v829, %v820
    %v1100 = vpack.c.b16 %v830, %v821
    %v1101 = vpack.c.b16 %v831, %v822
    %v1102 = vpack.c.b16 %v832, %v823
    %v1103 = vpack.c.b16 %v833, %v824
    %v1104 = vpack.c.b16 %v834, %v825
    %v1105 = vpack.c.b16 %v844, %v835
    %v1106 = vpack.c.b16 %v845, %v836
    %v1107 = vpack.c.b16 %v846, %v837
    %v1108 = vpack.c.b16 %v847, %v838
    %v1109 = vpack.c.b16 %v848, %v839
    %v1110 = vpack.c.b16 %v849, %v840
    %v1111 = vpack.c.b16 %v850, %v841
    %v1112 = vpack.c.b16 %v851, %v842
    %v1113 = vpack.c.b16 %v852, %v843
    %v1114 = vpack.c.b16 %v862, %v853
    %v1115 = vpack.c.b16 %v863, %v854
    %v1116 = vpack.c.b16 %v864, %v855
    %v1117 = vpack.c.b16 %v865, %v856
    %v1118 = vpack.c.b16 %v866, %v857
    %v1119 = vpack.c.b16 %v867, %v858
    %v1120 = vpack.c.b16 %v868, %v859
    %v1121 = vpack.c.b16 %v869, %v860
    %v1122 = vpack.c.b16 %v870, %v861
    %v1123 = vpack.c.b16 %v880, %v871
    %v1124 = vpack.c.b16 %v881, %v872
    %v1125 = vpack.c.b16 %v882, %v873
    %v1126 = vpack.c.b16 %v883, %v874
    %v1127 = vpack.c.b16 %v884, %v875
    %v1128 = vpack.c.b16 %v885, %v876
    %v1129 = vpack.c.b16 %v886, %v877
    %v1130 = vpack.c.b16 %v887, %v878
    %v1131 = vpack.c.b16 %v888, %v879
    %v1132 = vpack.c.b16 %v898, %v889
    %v1133 = vpack.c.b16 %v899, %v890
    %v1134 = vpack.c.b16 %v900, %v891
    %v1135 = vpack.c.b16 %v901, %v892
    %v1136 = vpack.c.b16 %v902, %v893
    %v1137 = vpack.c.b16 %v903, %v894
    %v1138 = vpack.c.b16 %v904, %v895
    %v1139 = vpack.c.b16 %v905, %v896
    %v1140 = vpack.c.b16 %v906, %v897
    %v1141 = vpack.c.b16 %v916, %v907
    %v1142 = vpack.c.b16 %v917, %v908
    %v1143 = vpack.c.b16 %v918, %v909
    %v1144 = vpack.c.b16 %v919, %v910
    %v1145 = vpack.c.b16 %v920, %v911
    %v1146 = vpack.c.b16 %v921, %v912
    %v1147 = vpack.c.b16 %v922, %v913
    %v1148 = vpack.c.b16 %v923, %v914
    %v1149 = vpack.c.b16 %v924, %v915
    %v1150 = vpack.c.b16 %v934, %v925
    %v1151 = vpack.c.b16 %v935, %v926
    %v1152 = vpack.c.b16 %v936, %v927
    %v1153 = vpack.c.b16 %v937, %v928
    %v1154 = vpack.c.b16 %v938, %v929
    %v1155 = vpack.c.b16 %v939, %v930
    %v1156 = vpack.c.b16 %v940, %v931
    %v1157 = vpack.c.b16 %v941, %v932
    %v1158 = vpack.c.b16 %v942, %v933
    %v1159 = vpack.c.b16 %v952, %v943
    %v1160 = vpack.c.b16 %v953, %v944
    %v1161 = vpack.c.b16 %v954, %v945
    %v1162 = vpack.c.b16 %v955, %v946
    %v1163 = vpack.c.b16 %v956, %v947
    %v1164 = vpack.c.b16 %v957, %v948
    %v1165 = vpack.c.b16 %v958, %v949
    %v1166 = vpack.c.b16 %v959, %v950
    %v1167 = vpack.c.b16 %v960, %v951
    %v1168 = vpack.c.b16 %v970, %v961
    %v1169 = vpack.c.b16 %v971, %v962
    %v1170 = vpack.c.b16 %v972, %v963
    %v1171 = vpack.c.b16 %v973, %v964
    %v1172 = vpack.c.b16 %v974, %v965
    %v1173 = vpack.c.b16 %v975, %v966
    %v1174 = vpack.c.b16 %v976, %v967
    %v1175 = vpack.c.b16 %v977, %v968
    %v1176 = vpack.c.b16 %v978, %v969
    %v1177 = vpack.c.b16 %v988, %v979
    %v1178 = vpack.c.b16 %v989, %v980
    %v1179 = vpack.c.b16 %v990, %v981
    %v1180 = vpack.c.b16 %v991, %v982
    %v1181 = vpack.c.b16 %v992, %v983
    %v1182 = vpack.c.b16 %v993, %v984
    %v1183 = vpack.c.b16 %v994, %v985
    %v1184 = vpack.c.b16 %v995, %v986
    %v1185 = vpack.c.b16 %v996, %v987
    %v1186 = vpack.c.b16 %v1006, %v997
    %v1187 = vpack.c.b16 %v1007, %v998
    %v1188 = vpack.c.b16 %v1008, %v999
    %v1189 = vpack.c.b16 %v1009, %v1000
    %v1190 = vpack.c.b16 %v1010, %v1001
    %v1191 = vpack.c.b16 %v1011, %v1002
    %v1192 = vpack.c.b16 %v1012, %v1003
    %v1193 = vpack.c.b16 %v1013, %v1004
    %v1194 = vpack.c.b16 %v1014, %v1005
    %v1195 = vpack.c.b16 %v1024, %v1015
    %v1196 = vpack.c.b16 %v1025, %v1016
    %v1197 = vpack.c.b16 %v1026, %v1017
    %v1198 = vpack.c.b16 %v1027, %v1018
    %v1199 = vpack.c.b16 %v1028, %v1019
    %v1200 = vpack.c.b16 %v1029, %v1020
    %v1201 = vpack.c.b16 %v1030, %v1021
    %v1202 = vpack.c.b16 %v1031, %v1022
    %v1203 = vpack.c.b16 %v1032, %v1023
    %v1204 = vpack.c.b16 %v1042, %v1033
    %v1205 = vpack.c.b16 %v1043, %v1034
    %v1206 = vpack.c.b16 %v1044, %v1035
    %v1207 = vpack.c.b16 %v1045, %v1036
    %v1208 = vpack.c.b16 %v1046, %v1037
    %v1209 = vpack.c.b16 %v1047, %v1038
    %v1210 = vpack.c.b16 %v1048, %v1039
    %v1211 = vpack.c.b16 %v1049, %v1040
    %v1212 = vpack.c.b16 %v1050, %v1041
    %v1213 = vpack.c.b16 %v1060, %v1051
    %v1214 = vpack.c.b16 %v1061, %v1052
    %v1215 = vpack.c.b16 %v1062, %v1053
    %v1216 = vpack.c.b16 %v1063, %v1054
    %v1217 = vpack.c.b16 %v1064, %v1055
    %v1218 = vpack.c.b16 %v1065, %v1056
    %v1219 = vpack.c.b16 %v1066, %v1057
    %v1220 = vpack.c.b16 %v1067, %v1058
    %v1221 = vpack.c.b16 %v1068, %v1059
    %v1222 = vpack.c.b16 %v1078, %v1069
    %v1223 = vpack.c.b16 %v1079, %v1070
    %v1224 = vpack.c.b16 %v1080, %v1071
    %v1225 = vpack.c.b16 %v1081, %v1072
    %v1226 = vpack.c.b16 %v1082, %v1073
    %v1227 = vpack.c.b16 %v1083, %v1074
    %v1228 = vpack.c.b16 %v1084, %v1075
    %v1229 = vpack.c.b16 %v1085, %v1076
    %v1230 = vpack.c.b16 %v1086, %v1077
    %1375 = vmatprep.subr.bf16.mxu0 %v1088
    %1376 = vmatpush1.bf16.msra.mxu0 %v1087
    %1377 = vmatprep.subr.bf16.mxu0 %v1097
    %1378 = vmatpush1.bf16.msra.mxu0 %v1096
    %1379 = vmatprep.subr.bf16.mxu0 %v1106
    %1380 = vmatpush1.bf16.msra.mxu0 %v1105
    %1381 = vmatprep.subr.bf16.mxu0 %v1115
    %1382 = vmatpush1.bf16.msra.mxu0 %v1114
    %1383 = vmatprep.subr.bf16.mxu0 %v1124
    %1384 = vmatpush1.bf16.msra.mxu0 %v1123
    %1385 = vmatprep.subr.bf16.mxu0 %v1133
    %1386 = vmatpush1.bf16.msra.mxu0 %v1132
    %1387 = vmatprep.subr.bf16.mxu0 %v1142
    %1388 = vmatpush1.bf16.msra.mxu0 %v1141
    %1389 = vmatprep.subr.bf16.mxu0 %v1151
    %1390 = vmatpush1.bf16.msra.mxu0 %v1150
    %1391 = vmatprep.subr.bf16.mxu0 %v1160
    %1392 = vmatpush1.bf16.msra.mxu0 %v1159
    %1393 = vmatprep.subr.bf16.mxu0 %v1169
    %1394 = vmatpush1.bf16.msra.mxu0 %v1168
    %1395 = vmatprep.subr.bf16.mxu0 %v1178
    %1396 = vmatpush1.bf16.msra.mxu0 %v1177
    %1397 = vmatprep.subr.bf16.mxu0 %v1187
    %1398 = vmatpush1.bf16.msra.mxu0 %v1186
    %1399 = vmatprep.subr.bf16.mxu0 %v1196
    %1400 = vmatpush1.bf16.msra.mxu0 %v1195
    %1401 = vmatprep.subr.bf16.mxu0 %v1205
    %1402 = vmatpush1.bf16.msra.mxu0 %v1204
    %1403 = vmatprep.subr.bf16.mxu0 %v1214
    %1404 = vmatpush1.bf16.msra.mxu0 %v1213
    %1405 = vmatprep.subr.bf16.mxu0 %v1223
    %1406 = vmatpush1.bf16.msra.mxu0 %v1222
    %1407 = vmatprep.mubr.bf16.mxu0 %v429
    %1408 = vmatmul.mubr.bf16.gmra.mrb[0].mxu0 %v428
    %v1409 = vpop.f32.mrb[0].mxu0
    %v1410 = vadd.f32 %v597, %v1409
    %v1411 = vpop.f32.mrb[0].mxu0
    %v1412 = vadd.f32 %v601, %v1411
    %v1413 = vpop.f32.mrb[0].mxu0
    %v1414 = vadd.f32 %v597, %v1413
    %v1415 = vpop.f32.mrb[0].mxu0
    %v1416 = vadd.f32 %v601, %v1415
    %1417 = vdwg.mxu0
    %1418 = vmatprep.subr.bf16.mxu0 %v1090
    %1419 = vmatpush1.bf16.msra.mxu0 %v1089
    %1420 = vmatprep.subr.bf16.mxu0 %v1099
    %1421 = vmatpush1.bf16.msra.mxu0 %v1098
    %1422 = vmatprep.subr.bf16.mxu0 %v1108
    %1423 = vmatpush1.bf16.msra.mxu0 %v1107
    %1424 = vmatprep.subr.bf16.mxu0 %v1117
    %1425 = vmatpush1.bf16.msra.mxu0 %v1116
    %1426 = vmatprep.subr.bf16.mxu0 %v1126
    %1427 = vmatpush1.bf16.msra.mxu0 %v1125
    %1428 = vmatprep.subr.bf16.mxu0 %v1135
    %1429 = vmatpush1.bf16.msra.mxu0 %v1134
    %1430 = vmatprep.subr.bf16.mxu0 %v1144
    %1431 = vmatpush1.bf16.msra.mxu0 %v1143
    %1432 = vmatprep.subr.bf16.mxu0 %v1153
    %1433 = vmatpush1.bf16.msra.mxu0 %v1152
    %1434 = vmatprep.subr.bf16.mxu0 %v1162
    %1435 = vmatpush1.bf16.msra.mxu0 %v1161
    %1436 = vmatprep.subr.bf16.mxu0 %v1171
    %1437 = vmatpush1.bf16.msra.mxu0 %v1170
    %1438 = vmatprep.subr.bf16.mxu0 %v1180
    %1439 = vmatpush1.bf16.msra.mxu0 %v1179
    %1440 = vmatprep.subr.bf16.mxu0 %v1189
    %1441 = vmatpush1.bf16.msra.mxu0 %v1188
    %1442 = vmatprep.subr.bf16.mxu0 %v1198
    %1443 = vmatpush1.bf16.msra.mxu0 %v1197
    %1444 = vmatprep.subr.bf16.mxu0 %v1207
    %1445 = vmatpush1.bf16.msra.mxu0 %v1206
    %1446 = vmatprep.subr.bf16.mxu0 %v1216
    %1447 = vmatpush1.bf16.msra.mxu0 %v1215
    %1448 = vmatprep.subr.bf16.mxu0 %v1225
    %1449 = vmatpush1.bf16.msra.mxu0 %v1224
    %1450 = vmatprep.mubr.bf16.mxu0 %v429
    %1451 = vmatmul.mubr.bf16.gmra.mrb[0].mxu0 %v428
    %v1452 = vpop.f32.mrb[0].mxu0
    %v1453 = vadd.f32 %v605, %v1452
    %v1454 = vpop.f32.mrb[0].mxu0
    %v1455 = vadd.f32 %v609, %v1454
    %v1456 = vpop.f32.mrb[0].mxu0
    %v1457 = vadd.f32 %v605, %v1456
    %v1458 = vpop.f32.mrb[0].mxu0
    %v1459 = vadd.f32 %v609, %v1458
    %1460 = vdwg.mxu0
    %1461 = vmatprep.subr.bf16.mxu0 %v1092
    %1462 = vmatpush1.bf16.msra.mxu0 %v1091
    %1463 = vmatprep.subr.bf16.mxu0 %v1101
    %1464 = vmatpush1.bf16.msra.mxu0 %v1100
    %1465 = vmatprep.subr.bf16.mxu0 %v1110
    %1466 = vmatpush1.bf16.msra.mxu0 %v1109
    %1467 = vmatprep.subr.bf16.mxu0 %v1119
    %1468 = vmatpush1.bf16.msra.mxu0 %v1118
    %1469 = vmatprep.subr.bf16.mxu0 %v1128
    %1470 = vmatpush1.bf16.msra.mxu0 %v1127
    %1471 = vmatprep.subr.bf16.mxu0 %v1137
    %1472 = vmatpush1.bf16.msra.mxu0 %v1136
    %1473 = vmatprep.subr.bf16.mxu0 %v1146
    %1474 = vmatpush1.bf16.msra.mxu0 %v1145
    %1475 = vmatprep.subr.bf16.mxu0 %v1155
    %1476 = vmatpush1.bf16.msra.mxu0 %v1154
    %1477 = vmatprep.subr.bf16.mxu0 %v1164
    %1478 = vmatpush1.bf16.msra.mxu0 %v1163
    %1479 = vmatprep.subr.bf16.mxu0 %v1173
    %1480 = vmatpush1.bf16.msra.mxu0 %v1172
    %1481 = vmatprep.subr.bf16.mxu0 %v1182
    %1482 = vmatpush1.bf16.msra.mxu0 %v1181
    %1483 = vmatprep.subr.bf16.mxu0 %v1191
    %1484 = vmatpush1.bf16.msra.mxu0 %v1190
    %1485 = vmatprep.subr.bf16.mxu0 %v1200
    %1486 = vmatpush1.bf16.msra.mxu0 %v1199
    %1487 = vmatprep.subr.bf16.mxu0 %v1209
    %1488 = vmatpush1.bf16.msra.mxu0 %v1208
    %1489 = vmatprep.subr.bf16.mxu0 %v1218
    %1490 = vmatpush1.bf16.msra.mxu0 %v1217
    %1491 = vmatprep.subr.bf16.mxu0 %v1227
    %1492 = vmatpush1.bf16.msra.mxu0 %v1226
    %1493 = vmatprep.mubr.bf16.mxu0 %v429
    %1494 = vmatmul.mubr.bf16.gmra.mrb[0].mxu0 %v428
    %v1495 = vpop.f32.mrb[0].mxu0
    %v1496 = vadd.f32 %v613, %v1495
    %v1497 = vpop.f32.mrb[0].mxu0
    %v1498 = vadd.f32 %v617, %v1497
    %v1499 = vpop.f32.mrb[0].mxu0
    %v1500 = vadd.f32 %v613, %v1499
    %v1501 = vpop.f32.mrb[0].mxu0
    %v1502 = vadd.f32 %v617, %v1501
    %1503 = vdwg.mxu0
    %1504 = vmatprep.subr.bf16.mxu0 %v1094
    %1505 = vmatpush1.bf16.msra.mxu0 %v1093
    %1506 = vmatprep.subr.bf16.mxu0 %v1103
    %1507 = vmatpush1.bf16.msra.mxu0 %v1102
    %1508 = vmatprep.subr.bf16.mxu0 %v1112
    %1509 = vmatpush1.bf16.msra.mxu0 %v1111
    %1510 = vmatprep.subr.bf16.mxu0 %v1121
    %1511 = vmatpush1.bf16.msra.mxu0 %v1120
    %1512 = vmatprep.subr.bf16.mxu0 %v1130
    %1513 = vmatpush1.bf16.msra.mxu0 %v1129
    %1514 = vmatprep.subr.bf16.mxu0 %v1139
    %1515 = vmatpush1.bf16.msra.mxu0 %v1138
    %1516 = vmatprep.subr.bf16.mxu0 %v1148
    %1517 = vmatpush1.bf16.msra.mxu0 %v1147
    %1518 = vmatprep.subr.bf16.mxu0 %v1157
    %1519 = vmatpush1.bf16.msra.mxu0 %v1156
    %1520 = vmatprep.subr.bf16.mxu0 %v1166
    %1521 = vmatpush1.bf16.msra.mxu0 %v1165
    %1522 = vmatprep.subr.bf16.mxu0 %v1175
    %1523 = vmatpush1.bf16.msra.mxu0 %v1174
    %1524 = vmatprep.subr.bf16.mxu0 %v1184
    %1525 = vmatpush1.bf16.msra.mxu0 %v1183
    %1526 = vmatprep.subr.bf16.mxu0 %v1193
    %1527 = vmatpush1.bf16.msra.mxu0 %v1192
    %1528 = vmatprep.subr.bf16.mxu0 %v1202
    %1529 = vmatpush1.bf16.msra.mxu0 %v1201
    %1530 = vmatprep.subr.bf16.mxu0 %v1211
    %1531 = vmatpush1.bf16.msra.mxu0 %v1210
    %1532 = vmatprep.subr.bf16.mxu0 %v1220
    %1533 = vmatpush1.bf16.msra.mxu0 %v1219
    %1534 = vmatprep.subr.bf16.mxu0 %v1229
    %1535 = vmatpush1.bf16.msra.mxu0 %v1228
    %1536 = vmatprep.mubr.bf16.mxu0 %v429
    %1537 = vmatmul.mubr.bf16.gmra.mrb[0].mxu0 %v428
    %v1538 = vpop.f32.mrb[0].mxu0
    %v1539 = vadd.f32 %v621, %v1538
    %v1540 = vpop.f32.mrb[0].mxu0
    %v1541 = vadd.f32 %v625, %v1540
    %v1542 = vpop.f32.mrb[0].mxu0
    %v1543 = vadd.f32 %v621, %v1542
    %v1544 = vpop.f32.mrb[0].mxu0
    %v1545 = vadd.f32 %v625, %v1544
    %1546 = vdwg.mxu0
    %1547 = vmatprep.subr.bf16.mxu0 0
    %1548 = vmatpush1.bf16.msra.mxu0 %v1095
    %1549 = vmatprep.subr.bf16.mxu0 0
    %1550 = vmatpush1.bf16.msra.mxu0 %v1104
    %1551 = vmatprep.subr.bf16.mxu0 0
    %1552 = vmatpush1.bf16.msra.mxu0 %v1113
    %1553 = vmatprep.subr.bf16.mxu0 0
    %1554 = vmatpush1.bf16.msra.mxu0 %v1122
    %1555 = vmatprep.subr.bf16.mxu0 0
    %1556 = vmatpush1.bf16.msra.mxu0 %v1131
    %1557 = vmatprep.subr.bf16.mxu0 0
    %1558 = vmatpush1.bf16.msra.mxu0 %v1140
    %1559 = vmatprep.subr.bf16.mxu0 0
    %1560 = vmatpush1.bf16.msra.mxu0 %v1149
    %1561 = vmatprep.subr.bf16.mxu0 0
    %1562 = vmatpush1.bf16.msra.mxu0 %v1158
    %1563 = vmatprep.subr.bf16.mxu0 0
    %1564 = vmatpush1.bf16.msra.mxu0 %v1167
    %1565 = vmatprep.subr.bf16.mxu0 0
    %1566 = vmatpush1.bf16.msra.mxu0 %v1176
    %1567 = vmatprep.subr.bf16.mxu0 0
    %1568 = vmatpush1.bf16.msra.mxu0 %v1185
    %1569 = vmatprep.subr.bf16.mxu0 0
    %1570 = vmatpush1.bf16.msra.mxu0 %v1194
    %1571 = vmatprep.subr.bf16.mxu0 0
    %1572 = vmatpush1.bf16.msra.mxu0 %v1203
    %1573 = vmatprep.subr.bf16.mxu0 0
    %1574 = vmatpush1.bf16.msra.mxu0 %v1212
    %1575 = vmatprep.subr.bf16.mxu0 0
    %1576 = vmatpush1.bf16.msra.mxu0 %v1221
    %1577 = vmatprep.subr.bf16.mxu0 0
    %1578 = vmatpush1.bf16.msra.mxu0 %v1230
    %1579 = vmatprep.mubr.bf16.mxu0 %v429
    %1580 = vmatmul.mubr.bf16.gmra.mrb[0].mxu0 %v428
    %v1581 = vpop.f32.mrb[0].mxu0
    %v1582 = vadd.f32 %v629, %v1581
    %v1583 = vpop.f32.mrb[0].mxu0
    %v1584 = vpop.f32.mrb[0].mxu0
    %v1585 = vadd.f32 %v629, %v1584
    %v1586 = vpop.f32.mrb[0].mxu0
    %1587 = vdwg.mxu0
    %1588 = vst [vmem:[#allocation9] sm:$0xff] %v1410
    %1589 = vst [vmem:[#allocation9 + $0x8] sm:$0xff] %v1412
    %1590 = vst.msk [vmem:[#allocation9 + $0x10] sm:$0xff] %vm330, %v1453
    %1591 = vst [vmem:[#allocation9 + $0x18] sm:$0xff] %v1414
    %1592 = vst [vmem:[#allocation9 + $0x20] sm:$0xff] %v1416
    %1593 = vst.msk [vmem:[#allocation9 + $0x28] sm:$0xff] %vm330, %v1457
    %1594 = vst [vmem:[#allocation11] sm:$0xff] %v1455
    %1595 = vst [vmem:[#allocation11 + $0x8] sm:$0xff] %v1496
    %1596 = vst.msk [vmem:[#allocation11 + $0x10] sm:$0xff] %vm330, %v1498
    %1597 = vst [vmem:[#allocation11 + $0x18] sm:$0xff] %v1459
    %1598 = vst [vmem:[#allocation11 + $0x20] sm:$0xff] %v1500
    %1599 = vst.msk [vmem:[#allocation11 + $0x28] sm:$0xff] %vm330, %v1502
    %1600 = vst [vmem:[#allocation12] sm:$0xff] %v1539
    %1601 = vst [vmem:[#allocation12 + $0x8] sm:$0xff] %v1541
    %1602 = vst.msk [vmem:[#allocation12 + $0x10] sm:$0xff] %vm330, %v1582
    %1603 = vst [vmem:[#allocation12 + $0x18] sm:$0xff] %v1543
    %1604 = vst [vmem:[#allocation12 + $0x20] sm:$0xff] %v1545
    %1605 = vst.msk [vmem:[#allocation12 + $0x28] sm:$0xff] %vm330, %v1585
    // Predicated region
    $region34: #{_forward_impl.1} parent=1 // pred_check
      _
    $region35: #{_forward_impl.1} parent=1 // pred_check_branch
      %1607 = sbr.rel (0) target = $region37
    $region36: #{_forward_impl.1} parent=1 // pred_region
      %s1609 = ssub.s32 512, 512
      %1610 = vsyncadd [#allocation4], %s1609
      %s1611 = sshll.u32 [#allocation8], 4
      %s1612 = int_to_ptr.vmem [resolvable:$true] %s1611
      %1617 = dma.vmem_to_hbm [thread:$0]  %s1612, 512, %s5, [#allocation4], 256, 256, 16
    $region37: #{_forward_impl.1} parent=1 // pred_fallthru
      _
    // Predicated region
    $region38: #{_forward_impl.1} parent=1 // pred_check
      _
    $region39: #{_forward_impl.1} parent=1 // pred_check_branch
      %1619 = sbr.rel (0) target = $region41
    $region40: #{_forward_impl.1} parent=1 // pred_region
      %s1621 = ssub.s32 768, 768
      %1622 = vsyncadd [#allocation10], %s1621
      %s1623 = sshll.u32 [#allocation9], 4
      %s1624 = int_to_ptr.vmem [resolvable:$true] %s1623
      %1629 = dma.vmem_to_hbm [thread:$0]  %s1624, 768, %s6, [#allocation10], 384, 384, 24
    $region41: #{_forward_impl.1} parent=1 // pred_fallthru
      _
    // Predicated region
    $region42: #{_forward_impl.1} parent=1 // pred_check
      _
    $region43: #{_forward_impl.1} parent=1 // pred_check_branch
      %1631 = sbr.rel (0) target = $region45
    $region44: #{_forward_impl.1} parent=1 // pred_region
      %s1633 = ssub.s32 768, 768
      %1634 = vsyncadd [#allocation10], %s1633
      %s1635 = sshll.u32 [#allocation11], 4
      %s1636 = int_to_ptr.vmem [resolvable:$true] %s1635
      %1641 = dma.vmem_to_hbm [thread:$0]  %s1636, 768, %s7, [#allocation10], 384, 384, 24
    $region45: #{_forward_impl.1} parent=1 // pred_fallthru
      _
    // Predicated region
    $region46: #{_forward_impl.1} parent=1 // pred_check
      _
    $region47: #{_forward_impl.1} parent=1 // pred_check_branch
      %1643 = sbr.rel (0) target = $region49
    $region48: #{_forward_impl.1} parent=1 // pred_region
      %s1645 = ssub.s32 768, 768
      %1646 = vsyncadd [#allocation13], %s1645
      %s1647 = sshll.u32 [#allocation12], 4
      %s1648 = int_to_ptr.vmem [resolvable:$true] %s1647
      %1653 = dma.vmem_to_hbm [thread:$0]  %s1648, 768, %s8, [#allocation13], 384, 384, 24
    $region49: #{_forward_impl.1} parent=1 // pred_fallthru
      _
    // Predicated region
    $region50: #{_forward_impl.1} parent=1 // pred_check
      _
    $region51: #{_forward_impl.1} parent=1 // pred_check_branch
      %1655 = sbr.rel (0) target = $region53
    $region52: #{_forward_impl.1} parent=1 // pred_region
      %1656 = dma.done [#allocation4], 512
    $region53: #{_forward_impl.1} parent=1 // pred_fallthru
      _
    // Predicated region
    $region54: #{_forward_impl.1} parent=1 // pred_check
      _
    $region55: #{_forward_impl.1} parent=1 // pred_check_branch
      %1658 = sbr.rel (0) target = $region57
    $region56: #{_forward_impl.1} parent=1 // pred_region
      %1659 = dma.done [#allocation10], 768
    $region57: #{_forward_impl.1} parent=1 // pred_fallthru
      _
    // Predicated region
    $region58: #{_forward_impl.1} parent=1 // pred_check
      _
    $region59: #{_forward_impl.1} parent=1 // pred_check_branch
      %1661 = sbr.rel (0) target = $region61
    $region60: #{_forward_impl.1} parent=1 // pred_region
      %1662 = dma.done [#allocation10], 768
    $region61: #{_forward_impl.1} parent=1 // pred_fallthru
      _
    // Predicated region
    $region62: #{_forward_impl.1} parent=1 // pred_check
      _
    $region63: #{_forward_impl.1} parent=1 // pred_check_branch
      %1664 = sbr.rel (0) target = $region65
    $region64: #{_forward_impl.1} parent=1 // pred_region
      %1665 = dma.done [#allocation13], 768
    $region65: #{_forward_impl.1} parent=1 // pred_fallthru
      _
    %1666 = vsyncpa [#allocation3], 1
    %1667 = vsyncpa [#allocation6], 1
    %1668 = vsyncpa [#allocation4], 1
    %1669 = vsyncpa [#allocation10], 1
    %1670 = vsyncpa [#allocation13], 1

// kernel: _forward_impl.1
$region0: #{_forward_impl.1}
  #allocation0 [shape = 'u32[]', space=smem, size = 0x4, offset = 0x4, fixed_abs, tag = 'smem constant byte address 0x4 - core index']
  #allocation1 [shape = 'u32[144,128]{1,0:T(1,128)}', space=vmem, size = 0x12000, scoped, tag = 'internal scratch']
  %s0 = inlined_call_operand.hbm [shape: f32[16,320], index: 0, kind: input, shape index: {}]
  %s1 = inlined_call_operand.hbm [shape: bf16[320,256], index: 1, kind: input, shape index: {}]
  %s2 = inlined_call_operand.vmem [shape: f32[1,256], index: 2, kind: input, shape index: {}]
  %s3 = inlined_call_operand.hbm [shape: bf16[256,1152], index: 3, kind: input, shape index: {}]
  %s4 = inlined_call_operand.vmem [shape: f32[1,1152], index: 4, kind: input, shape index: {}]
  %s5 = inlined_call_operand.hbm [shape: f32[16,256], index: 5, kind: output, shape index: {0}]
  %s6 = inlined_call_operand.hbm [shape: f32[16,320], index: 6, kind: output, shape index: {1}]
  %s7 = inlined_call_operand.hbm [shape: f32[16,320], index: 7, kind: output, shape index: {2}]
  %s8 = inlined_call_operand.hbm [shape: f32[16,320], index: 8, kind: output, shape index: {3}]
  %9 = xla_tuple %s5, %s6, %s7, %s8
  %s10 = sld [smem:[#allocation0]]
  $region66: #{_forward_impl.1} parent=0
    _
  %s12 = ssub.s32 1, %s10
  %s13 = scalar_select 0, %s12, %s10
  $region1: #{_forward_impl.1} parent=0
    #allocation2 [shape = 'u8[24576]{0}', space=vmem, size = 0x6000, scoped, tag = 'input window, operand 0, single buffered']
    #allocation3 [shape = 's32[1]{0}', space=sflag, size = 0x4, scoped, tag = 'scoped memory for _forward_impl.1']
    #allocation4 [shape = 's32[1]{0}', space=sflag, size = 0x4, scoped, tag = 'scoped memory for _forward_impl.1']
    #allocation5 [shape = 'u8[163840]{0}', space=vmem, size = 0x28000, scoped, tag = 'input window, operand 1, single buffered']
    #allocation6 [shape = 's32[1]{0}', space=sflag, size = 0x4, scoped, tag = 'scoped memory for _forward_impl.1']
    #allocation7 [shape = 'u8[589824]{0}', space=vmem, size = 0x90000, scoped, tag = 'input window, operand 3, single buffered']
    #allocation8 [shape = 'u8[16384]{0}', space=vmem, size = 0x4000, scoped, tag = 'output window, operand 0, single buffered']
    #allocation9 [shape = 'u8[24576]{0}', space=vmem, size = 0x6000, scoped, tag = 'output window, operand 1, single buffered']
    #allocation10 [shape = 's32[1]{0}', space=sflag, size = 0x4, scoped, tag = 'scoped memory for _forward_impl.1']
    #allocation11 [shape = 'u8[24576]{0}', space=vmem, size = 0x6000, scoped, tag = 'output window, operand 2, single buffered']
    #allocation12 [shape = 'u8[24576]{0}', space=vmem, size = 0x6000, scoped, tag = 'output window, operand 3, single buffered']
    #allocation13 [shape = 's32[1]{0}', space=sflag, size = 0x4, scoped, tag = 'scoped memory for _forward_impl.1']
    %14 = vsyncpa [#allocation3], 0
    %15 = vsyncpa [#allocation6], 0
    %16 = vsyncpa [#allocation4], 0
    %17 = vsyncpa [#allocation10], 0
    %18 = vsyncpa [#allocation13], 0
    // Predicated region
    $region2: #{_forward_impl.1} parent=1 // pred_check
      _
    $region3: #{_forward_impl.1} parent=1 // pred_check_branch
      %20 = sbr.rel (0) target = $region5
    $region4: #{_forward_impl.1} parent=1 // pred_region
      %s22 = ssub.s32 768, 768
      %23 = vsyncadd [#allocation3], %s22
      %s24 = sshll.u32 [#allocation2], 4
      %s25 = int_to_ptr.vmem [resolvable:$true] %s24
      %30 = dma.hbm_to_vmem [thread:$0]  %s0, 768, %s25, [#allocation3], 384, 384, 24
    $region5: #{_forward_impl.1} parent=1 // pred_fallthru
      _
    // Predicated region
    $region6: #{_forward_impl.1} parent=1 // pred_check
      _
    $region7: #{_forward_impl.1} parent=1 // pred_check_branch
      %32 = sbr.rel (0) target = $region9
    $region8: #{_forward_impl.1} parent=1 // pred_region
      %s34 = ssub.s32 5120, 5120
      %35 = vsyncadd [#allocation6], %s34
      %s36 = sshll.u32 [#allocation5], 4
      %s37 = int_to_ptr.vmem [resolvable:$true] %s36
      %42 = dma.hbm_to_vmem [thread:$0]  %s1, 5120, %s37, [#allocation6], 128, 128, 8
    $region9: #{_forward_impl.1} parent=1 // pred_fallthru
      _
    // Predicated region
    $region10: #{_forward_impl.1} parent=1 // pred_check
      _
    $region11: #{_forward_impl.1} parent=1 // pred_check_branch
      %44 = sbr.rel (0) target = $region13
    $region12: #{_forward_impl.1} parent=1 // pred_region
      _
    $region13: #{_forward_impl.1} parent=1 // pred_fallthru
      _
    // Predicated region
    $region14: #{_forward_impl.1} parent=1 // pred_check
      _
    $region15: #{_forward_impl.1} parent=1 // pred_check_branch
      %46 = sbr.rel (0) target = $region17
    $region16: #{_forward_impl.1} parent=1 // pred_region
      %s48 = ssub.s32 18432, 18432
      %49 = vsyncadd [#allocation6], %s48
      %s50 = sshll.u32 [#allocation7], 4
      %s51 = int_to_ptr.vmem [resolvable:$true] %s50
      %56 = dma.hbm_to_vmem [thread:$0]  %s3, 18432, %s51, [#allocation6], 576, 576, 36
    $region17: #{_forward_impl.1} parent=1 // pred_fallthru
      _
    // Predicated region
    $region18: #{_forward_impl.1} parent=1 // pred_check
      _
    $region19: #{_forward_impl.1} parent=1 // pred_check_branch
      %58 = sbr.rel (0) target = $region21
    $region20: #{_forward_impl.1} parent=1 // pred_region
      _
    $region21: #{_forward_impl.1} parent=1 // pred_fallthru
      _
    // Predicated region
    $region22: #{_forward_impl.1} parent=1 // pred_check
      _
    $region23: #{_forward_impl.1} parent=1 // pred_check_branch
      %60 = sbr.rel (0) target = $region25
    $region24: #{_forward_impl.1} parent=1 // pred_region
      %61 = dma.done [#allocation3], 768
    $region25: #{_forward_impl.1} parent=1 // pred_fallthru
      _
    // Predicated region
    $region26: #{_forward_impl.1} parent=1 // pred_check
      _
    $region27: #{_forward_impl.1} parent=1 // pred_check_branch
      %63 = sbr.rel (0) target = $region29
    $region28: #{_forward_impl.1} parent=1 // pred_region
      %64 = dma.done [#allocation6], 5120
    $region29: #{_forward_impl.1} parent=1 // pred_fallthru
      _
    // Predicated region
    $region30: #{_forward_impl.1} parent=1 // pred_check
      _
    $region31: #{_forward_impl.1} parent=1 // pred_check_branch
      %66 = sbr.rel (0) target = $region33
    $region32: #{_forward_impl.1} parent=1 // pred_region
      %67 = dma.done [#allocation6], 18432
    $region33: #{_forward_impl.1} parent=1 // pred_fallthru
      _
    %v69 = vld [vmem:[#allocation2] sm:$0xff]
    %v70 = vld [vmem:[#allocation2 + $0x8] sm:$0xff]
    %v71 = vld [vmem:[#allocation2 + $0x10] sm:$0xff]
    %v72 = vld [vmem:[#allocation2 + $0x18] sm:$0xff]
    %v73 = vld [vmem:[#allocation2 + $0x20] sm:$0xff]
    %v74 = vld [vmem:[#allocation2 + $0x28] sm:$0xff]
    %v75 = vpack.c.bf16 %v72, %v69
    %v76 = vpack.c.bf16 %v73, %v70
    %v77 = vpack.c.bf16 %v74, %v71
    %v78 = vld [vmem:[#allocation5] sm:$0xff]
    %v79 = vld [vmem:[#allocation5 + $0x8] sm:$0xff]
    %v80 = vld [vmem:[#allocation5 + $0x10] sm:$0xff]
    %v81 = vld [vmem:[#allocation5 + $0x18] sm:$0xff]
    %v82 = vld [vmem:[#allocation5 + $0x20] sm:$0xff]
    %v83 = vld [vmem:[#allocation5 + $0x28] sm:$0xff]
    %v84 = vld [vmem:[#allocation5 + $0x30] sm:$0xff]
    %v85 = vld [vmem:[#allocation5 + $0x38] sm:$0xff]
    %v86 = vld [vmem:[#allocation5 + $0x40] sm:$0xff]
    %v87 = vld [vmem:[#allocation5 + $0x48] sm:$0xff]
    %v88 = vld [vmem:[#allocation5 + $0x50] sm:$0xff]
    %v89 = vld [vmem:[#allocation5 + $0x58] sm:$0xff]
    %v90 = vld [vmem:[#allocation5 + $0x60] sm:$0xff]
    %v91 = vld [vmem:[#allocation5 + $0x68] sm:$0xff]
    %v92 = vld [vmem:[#allocation5 + $0x70] sm:$0xff]
    %v93 = vld [vmem:[#allocation5 + $0x78] sm:$0xff]
    %v94 = vld [vmem:[#allocation5 + $0x80] sm:$0xff]
    %v95 = vld [vmem:[#allocation5 + $0x88] sm:$0xff]
    %v96 = vld [vmem:[#allocation5 + $0x90] sm:$0xff]
    %v97 = vld [vmem:[#allocation5 + $0x98] sm:$0xff]
    %v98 = vld [vmem:[#allocation5 + $0xa0] sm:$0xff]
    %v99 = vld [vmem:[#allocation5 + $0xa8] sm:$0xff]
    %v100 = vld [vmem:[#allocation5 + $0xb0] sm:$0xff]
    %v101 = vld [vmem:[#allocation5 + $0xb8] sm:$0xff]
    %v102 = vld [vmem:[#allocation5 + $0xc0] sm:$0xff]
    %v103 = vld [vmem:[#allocation5 + $0xc8] sm:$0xff]
    %v104 = vld [vmem:[#allocation5 + $0xd0] sm:$0xff]
    %v105 = vld [vmem:[#allocation5 + $0xd8] sm:$0xff]
    %v106 = vld [vmem:[#allocation5 + $0xe0] sm:$0xff]
    %v107 = vld [vmem:[#allocation5 + $0xe8] sm:$0xff]
    %v108 = vld [vmem:[#allocation5 + $0xf0] sm:$0xff]
    %v109 = vld [vmem:[#allocation5 + $0xf8] sm:$0xff]
    %v110 = vld [vmem:[#allocation5 + $0x100] sm:$0xff]
    %v111 = vld [vmem:[#allocation5 + $0x108] sm:$0xff]
    %v112 = vld [vmem:[#allocation5 + $0x110] sm:$0xff]
    %v113 = vld [vmem:[#allocation5 + $0x118] sm:$0xff]
    %v114 = vld [vmem:[#allocation5 + $0x120] sm:$0xff]
    %v115 = vld [vmem:[#allocation5 + $0x128] sm:$0xff]
    %v116 = vld [vmem:[#allocation5 + $0x130] sm:$0xff]
    %v117 = vld [vmem:[#allocation5 + $0x138] sm:$0xff]
    %v118 = vld [vmem:[%s2] sm:$0x3]
    %v120 = vlaneseq
    %v121 = vshrl.u32 %v120, 7
    %v122 = vsub.s32 0, %v121
    %v123 = vrot.slane %v118, %v122
    %v124 = vlaneseq
    %v125 = vshrl.u32 %v124, 7
    %v126 = vsub.s32 1, %v125
    %v127 = vrot.slane %v118, %v126
    %v170 = vunpack.c.l.b16 %v78
    %v171 = vunpack.c.h.b16 %v78
    %v172 = vunpack.c.l.b16 %v79
    %v173 = vunpack.c.h.b16 %v79
    %v174 = vunpack.c.l.b16 %v80
    %v175 = vunpack.c.h.b16 %v80
    %v176 = vunpack.c.l.b16 %v81
    %v177 = vunpack.c.h.b16 %v81
    %v178 = vunpack.c.l.b16 %v82
    %v179 = vunpack.c.h.b16 %v82
    %v180 = vunpack.c.l.b16 %v83
    %v181 = vunpack.c.h.b16 %v83
    %v182 = vunpack.c.l.b16 %v84
    %v183 = vunpack.c.h.b16 %v84
    %v184 = vunpack.c.l.b16 %v85
    %v185 = vunpack.c.h.b16 %v85
    %v186 = vunpack.c.l.b16 %v86
    %v187 = vunpack.c.h.b16 %v86
    %v188 = vunpack.c.l.b16 %v87
    %v189 = vunpack.c.h.b16 %v87
    %v190 = vunpack.c.l.b16 %v88
    %v191 = vunpack.c.h.b16 %v88
    %v192 = vunpack.c.l.b16 %v89
    %v193 = vunpack.c.h.b16 %v89
    %v194 = vunpack.c.l.b16 %v90
    %v195 = vunpack.c.h.b16 %v90
    %v196 = vunpack.c.l.b16 %v91
    %v197 = vunpack.c.h.b16 %v91
    %v198 = vunpack.c.l.b16 %v92
    %v199 = vunpack.c.h.b16 %v92
    %v200 = vunpack.c.l.b16 %v93
    %v201 = vunpack.c.h.b16 %v93
    %v202 = vunpack.c.l.b16 %v94
    %v203 = vunpack.c.h.b16 %v94
    %v204 = vunpack.c.l.b16 %v95
    %v205 = vunpack.c.h.b16 %v95
    %v206 = vunpack.c.l.b16 %v96
    %v207 = vunpack.c.h.b16 %v96
    %v208 = vunpack.c.l.b16 %v97
    %v209 = vunpack.c.h.b16 %v97
    %v210 = vunpack.c.l.b16 %v98
    %v211 = vunpack.c.h.b16 %v98
    %v212 = vunpack.c.l.b16 %v99
    %v213 = vunpack.c.h.b16 %v99
    %v214 = vunpack.c.l.b16 %v100
    %v215 = vunpack.c.h.b16 %v100
    %v216 = vunpack.c.l.b16 %v101
    %v217 = vunpack.c.h.b16 %v101
    %v218 = vunpack.c.l.b16 %v102
    %v219 = vunpack.c.h.b16 %v102
    %v220 = vunpack.c.l.b16 %v103
    %v221 = vunpack.c.h.b16 %v103
    %v222 = vunpack.c.l.b16 %v104
    %v223 = vunpack.c.h.b16 %v104
    %v224 = vunpack.c.l.b16 %v105
    %v225 = vunpack.c.h.b16 %v105
    %v226 = vunpack.c.l.b16 %v106
    %v227 = vunpack.c.h.b16 %v106
    %v228 = vunpack.c.l.b16 %v107
    %v229 = vunpack.c.h.b16 %v107
    %v230 = vunpack.c.l.b16 %v108
    %v231 = vunpack.c.h.b16 %v108
    %v232 = vunpack.c.l.b16 %v109
    %v233 = vunpack.c.h.b16 %v109
    %v234 = vunpack.c.l.b16 %v110
    %v235 = vunpack.c.h.b16 %v110
    %v236 = vunpack.c.l.b16 %v111
    %v237 = vunpack.c.h.b16 %v111
    %v238 = vunpack.c.l.b16 %v112
    %v239 = vunpack.c.h.b16 %v112
    %v240 = vunpack.c.l.b16 %v113
    %v241 = vunpack.c.h.b16 %v113
    %v242 = vunpack.c.l.b16 %v114
    %v243 = vunpack.c.h.b16 %v114
    %v244 = vunpack.c.l.b16 %v115
    %v245 = vunpack.c.h.b16 %v115
    %v246 = vunpack.c.l.b16 %v116
    %v247 = vunpack.c.h.b16 %v116
    %v248 = vunpack.c.l.b16 %v117
    %v249 = vunpack.c.h.b16 %v117
    %v250 = vpack.c.b16 %v172, %v170
    %v251 = vpack.c.b16 %v173, %v171
    %v252 = vpack.c.b16 %v176, %v174
    %v253 = vpack.c.b16 %v177, %v175
    %v254 = vpack.c.b16 %v180, %v178
    %v255 = vpack.c.b16 %v181, %v179
    %v256 = vpack.c.b16 %v184, %v182
    %v257 = vpack.c.b16 %v185, %v183
    %v258 = vpack.c.b16 %v188, %v186
    %v259 = vpack.c.b16 %v189, %v187
    %v260 = vpack.c.b16 %v192, %v190
    %v261 = vpack.c.b16 %v193, %v191
    %v262 = vpack.c.b16 %v196, %v194
    %v263 = vpack.c.b16 %v197, %v195
    %v264 = vpack.c.b16 %v200, %v198
    %v265 = vpack.c.b16 %v201, %v199
    %v266 = vpack.c.b16 %v204, %v202
    %v267 = vpack.c.b16 %v205, %v203
    %v268 = vpack.c.b16 %v208, %v206
    %v269 = vpack.c.b16 %v209, %v207
    %v270 = vpack.c.b16 %v212, %v210
    %v271 = vpack.c.b16 %v213, %v211
    %v272 = vpack.c.b16 %v216, %v214
    %v273 = vpack.c.b16 %v217, %v215
    %v274 = vpack.c.b16 %v220, %v218
    %v275 = vpack.c.b16 %v221, %v219
    %v276 = vpack.c.b16 %v224, %v222
    %v277 = vpack.c.b16 %v225, %v223
    %v278 = vpack.c.b16 %v228, %v226
    %v279 = vpack.c.b16 %v229, %v227
    %v280 = vpack.c.b16 %v232, %v230
    %v281 = vpack.c.b16 %v233, %v231
    %v282 = vpack.c.b16 %v236, %v234
    %v283 = vpack.c.b16 %v237, %v235
    %v284 = vpack.c.b16 %v240, %v238
    %v285 = vpack.c.b16 %v241, %v239
    %v286 = vpack.c.b16 %v244, %v242
    %v287 = vpack.c.b16 %v245, %v243
    %v288 = vpack.c.b16 %v248, %v246
    %v289 = vpack.c.b16 %v249, %v247
    %vm330 = vcmask 523264
    %v332 = vsel %vm330, %v77, 0
    %334 = vmatprep.subr.bf16.mxu0 %v251
    %335 = vmatpush1.bf16.msra.mxu0 %v250
    %336 = vmatprep.subr.bf16.mxu0 %v253
    %337 = vmatpush1.bf16.msra.mxu0 %v252
    %338 = vmatprep.subr.bf16.mxu0 %v255
    %339 = vmatpush1.bf16.msra.mxu0 %v254
    %340 = vmatprep.subr.bf16.mxu0 %v257
    %341 = vmatpush1.bf16.msra.mxu0 %v256
    %342 = vmatprep.subr.bf16.mxu0 %v259
    %343 = vmatpush1.bf16.msra.mxu0 %v258
    %344 = vmatprep.subr.bf16.mxu0 %v261
    %345 = vmatpush1.bf16.msra.mxu0 %v260
    %346 = vmatprep.subr.bf16.mxu0 %v263
    %347 = vmatpush1.bf16.msra.mxu0 %v262
    %348 = vmatprep.subr.bf16.mxu0 %v265
    %349 = vmatpush1.bf16.msra.mxu0 %v264
    %350 = vmatprep.subr.bf16.mxu0 %v267
    %351 = vmatpush1.bf16.msra.mxu0 %v266
    %352 = vmatprep.subr.bf16.mxu0 %v269
    %353 = vmatpush1.bf16.msra.mxu0 %v268
    %354 = vmatprep.subr.bf16.mxu0 %v271
    %355 = vmatpush1.bf16.msra.mxu0 %v270
    %356 = vmatprep.subr.bf16.mxu0 %v273
    %357 = vmatpush1.bf16.msra.mxu0 %v272
    %358 = vmatprep.subr.bf16.mxu0 %v275
    %359 = vmatpush1.bf16.msra.mxu0 %v274
    %360 = vmatprep.subr.bf16.mxu0 %v277
    %361 = vmatpush1.bf16.msra.mxu0 %v276
    %362 = vmatprep.subr.bf16.mxu0 %v279
    %363 = vmatpush1.bf16.msra.mxu0 %v278
    %364 = vmatprep.subr.bf16.mxu0 %v281
    %365 = vmatpush1.bf16.msra.mxu0 %v280
    %366 = vmatprep.mubr.bf16.mxu0 %v76
    %367 = vmatmul.mubr.bf16.gmra.mrb[0].mxu0 %v75
    %v368 = vpop.f32.mrb[0].mxu0
    %v369 = vadd.f32 %v123, %v368
    %v370 = vpop.f32.mrb[0].mxu0
    %v371 = vadd.f32 %v127, %v370
    %v372 = vpop.f32.mrb[0].mxu0
    %v373 = vadd.f32 %v123, %v372
    %v374 = vpop.f32.mrb[0].mxu0
    %v375 = vadd.f32 %v127, %v374
    %376 = vdwg.mxu0
    %377 = vmatprep.subr.bf16.mxu0 %v283
    %378 = vmatpush1.bf16.msra.mxu0 %v282
    %379 = vmatprep.subr.bf16.mxu0 %v285
    %380 = vmatpush1.bf16.msra.mxu0 %v284
    %381 = vmatprep.subr.bf16.mxu0 %v287
    %382 = vmatpush1.bf16.msra.mxu0 %v286
    %383 = vmatprep.subr.bf16.mxu0 %v289
    %384 = vmatpush1.bf16.msra.mxu0 %v288
    %385 = vmatprep.subr.bf16.mxu0 0
    %386 = vmatpush1.bf16.msra.mxu0 0
    %387 = vmatprep.subr.bf16.mxu0 0
    %388 = vmatpush1.bf16.msra.mxu0 0
    %389 = vmatprep.subr.bf16.mxu0 0
    %390 = vmatpush1.bf16.msra.mxu0 0
    %391 = vmatprep.subr.bf16.mxu0 0
    %392 = vmatpush1.bf16.msra.mxu0 0
    %393 = vmatprep.subr.bf16.mxu0 0
    %394 = vmatpush1.bf16.msra.mxu0 0
    %395 = vmatprep.subr.bf16.mxu0 0
    %396 = vmatpush1.bf16.msra.mxu0 0
    %397 = vmatprep.subr.bf16.mxu0 0
    %398 = vmatpush1.bf16.msra.mxu0 0
    %399 = vmatprep.subr.bf16.mxu0 0
    %400 = vmatpush1.bf16.msra.mxu0 0
    %401 = vmatprep.subr.bf16.mxu0 0
    %402 = vmatpush1.bf16.msra.mxu0 0
    %403 = vmatprep.subr.bf16.mxu0 0
    %404 = vmatpush1.bf16.msra.mxu0 0
    %405 = vmatprep.subr.bf16.mxu0 0
    %406 = vmatpush1.bf16.msra.mxu0 0
    %407 = vmatprep.subr.bf16.mxu0 0
    %408 = vmatpush1.bf16.msra.mxu0 0
    %409 = vmatprep.mubr.bf16.mxu0 0
    %410 = vmatmul.mubr.bf16.gmra.mrb[0].mxu0 %v332
    %v411 = vpop.f32.mrb[0].mxu0
    %v412 = vadd.f32 %v369, %v411
    %v413 = vpop.f32.mrb[0].mxu0
    %v414 = vadd.f32 %v371, %v413
    %v415 = vpop.f32.mrb[0].mxu0
    %v416 = vadd.f32 %v373, %v415
    %v417 = vpop.f32.mrb[0].mxu0
    %v418 = vadd.f32 %v375, %v417
    %419 = vdwg.mxu0
    %v420 = vmax.f32 %v412, 0.0
    %v421 = vmax.f32 %v414, 0.0
    %v422 = vmax.f32 %v416, 0.0
    %v423 = vmax.f32 %v418, 0.0
    %424 = vst [vmem:[#allocation8] sm:$0xff] %v420
    %425 = vst [vmem:[#allocation8 + $0x8] sm:$0xff] %v421
    %426 = vst [vmem:[#allocation8 + $0x10] sm:$0xff] %v422
    %427 = vst [vmem:[#allocation8 + $0x18] sm:$0xff] %v423
    %v428 = vpack.c.bf16 %v422, %v420
    %v429 = vpack.c.bf16 %v423, %v421
    %v430 = vld [vmem:[#allocation7] sm:$0xff]
    %v431 = vld [vmem:[#allocation7 + $0x8] sm:$0xff]
    %v432 = vld [vmem:[#allocation7 + $0x10] sm:$0xff]
    %v433 = vld [vmem:[#allocation7 + $0x18] sm:$0xff]
    %v434 = vld [vmem:[#allocation7 + $0x20] sm:$0xf]
    %v435 = vld [vmem:[#allocation7 + $0x24] sm:$0xff]
    %v436 = vld [vmem:[#allocation7 + $0x2c] sm:$0xff]
    %v437 = vld [vmem:[#allocation7 + $0x34] sm:$0xff]
    %v438 = vld [vmem:[#allocation7 + $0x3c] sm:$0xff]
    %v439 = vld [vmem:[#allocation7 + $0x44] sm:$0xf]
    %v440 = vld [vmem:[#allocation7 + $0x48] sm:$0xff]
    %v441 = vld [vmem:[#allocation7 + $0x50] sm:$0xff]
    %v442 = vld [vmem:[#allocation7 + $0x58] sm:$0xff]
    %v443 = vld [vmem:[#allocation7 + $0x60] sm:$0xff]
    %v444 = vld [vmem:[#allocation7 + $0x68] sm:$0xf]
    %v445 = vld [vmem:[#allocation7 + $0x6c] sm:$0xff]
    %v446 = vld [vmem:[#allocation7 + $0x74] sm:$0xff]
    %v447 = vld [vmem:[#allocation7 + $0x7c] sm:$0xff]
    %v448 = vld [vmem:[#allocation7 + $0x84] sm:$0xff]
    %v449 = vld [vmem:[#allocation7 + $0x8c] sm:$0xf]
    %v450 = vld [vmem:[#allocation7 + $0x90] sm:$0xff]
    %v451 = vld [vmem:[#allocation7 + $0x98] sm:$0xff]
    %v452 = vld [vmem:[#allocation7 + $0xa0] sm:$0xff]
    %v453 = vld [vmem:[#allocation7 + $0xa8] sm:$0xff]
    %v454 = vld [vmem:[#allocation7 + $0xb0] sm:$0xf]
    %v455 = vld [vmem:[#allocation7 + $0xb4] sm:$0xff]
    %v456 = vld [vmem:[#allocation7 + $0xbc] sm:$0xff]
    %v457 = vld [vmem:[#allocation7 + $0xc4] sm:$0xff]
    %v458 = vld [vmem:[#allocation7 + $0xcc] sm:$0xff]
    %v459 = vld [vmem:[#allocation7 + $0xd4] sm:$0xf]
    %v460 = vld [vmem:[#allocation7 + $0xd8] sm:$0xff]
    %v461 = vld [vmem:[#allocation7 + $0xe0] sm:$0xff]
    %v462 = vld [vmem:[#allocation7 + $0xe8] sm:$0xff]
    %v463 = vld [vmem:[#allocation7 + $0xf0] sm:$0xff]
    %v464 = vld [vmem:[#allocation7 + $0xf8] sm:$0xf]
    %v465 = vld [vmem:[#allocation7 + $0xfc] sm:$0xff]
    %v466 = vld [vmem:[#allocation7 + $0x104] sm:$0xff]
    %v467 = vld [vmem:[#allocation7 + $0x10c] sm:$0xff]
    %v468 = vld [vmem:[#allocation7 + $0x114] sm:$0xff]
    %v469 = vld [vmem:[#allocation7 + $0x11c] sm:$0xf]
    %v470 = vld [vmem:[#allocation7 + $0x120] sm:$0xff]
    %v471 = vld [vmem:[#allocation7 + $0x128] sm:$0xff]
    %v472 = vld [vmem:[#allocation7 + $0x130] sm:$0xff]
    %v473 = vld [vmem:[#allocation7 + $0x138] sm:$0xff]
    %v474 = vld [vmem:[#allocation7 + $0x140] sm:$0xf]
    %v475 = vld [vmem:[#allocation7 + $0x144] sm:$0xff]
    %v476 = vld [vmem:[#allocation7 + $0x14c] sm:$0xff]
    %v477 = vld [vmem:[#allocation7 + $0x154] sm:$0xff]
    %v478 = vld [vmem:[#allocation7 + $0x15c] sm:$0xff]
    %v479 = vld [vmem:[#allocation7 + $0x164] sm:$0xf]
    %v480 = vld [vmem:[#allocation7 + $0x168] sm:$0xff]
    %v481 = vld [vmem:[#allocation7 + $0x170] sm:$0xff]
    %v482 = vld [vmem:[#allocation7 + $0x178] sm:$0xff]
    %v483 = vld [vmem:[#allocation7 + $0x180] sm:$0xff]
    %v484 = vld [vmem:[#allocation7 + $0x188] sm:$0xf]
    %v485 = vld [vmem:[#allocation7 + $0x18c] sm:$0xff]
    %v486 = vld [vmem:[#allocation7 + $0x194] sm:$0xff]
    %v487 = vld [vmem:[#allocation7 + $0x19c] sm:$0xff]
    %v488 = vld [vmem:[#allocation7 + $0x1a4] sm:$0xff]
    %v489 = vld [vmem:[#allocation7 + $0x1ac] sm:$0xf]
    %v490 = vld [vmem:[#allocation7 + $0x1b0] sm:$0xff]
    %v491 = vld [vmem:[#allocation7 + $0x1b8] sm:$0xff]
    %v492 = vld [vmem:[#allocation7 + $0x1c0] sm:$0xff]
    %v493 = vld [vmem:[#allocation7 + $0x1c8] sm:$0xff]
    %v494 = vld [vmem:[#allocation7 + $0x1d0] sm:$0xf]
    %v495 = vld [vmem:[#allocation7 + $0x1d4] sm:$0xff]
    %v496 = vld [vmem:[#allocation7 + $0x1dc] sm:$0xff]
    %v497 = vld [vmem:[#allocation7 + $0x1e4] sm:$0xff]
    %v498 = vld [vmem:[#allocation7 + $0x1ec] sm:$0xff]
    %v499 = vld [vmem:[#allocation7 + $0x1f4] sm:$0xf]
    %v500 = vld [vmem:[#allocation7 + $0x1f8] sm:$0xff]
    %v501 = vld [vmem:[#allocation7 + $0x200] sm:$0xff]
    %v502 = vld [vmem:[#allocation7 + $0x208] sm:$0xff]
    %v503 = vld [vmem:[#allocation7 + $0x210] sm:$0xff]
    %v504 = vld [vmem:[#allocation7 + $0x218] sm:$0xf]
    %v505 = vld [vmem:[#allocation7 + $0x21c] sm:$0xff]
    %v506 = vld [vmem:[#allocation7 + $0x224] sm:$0xff]
    %v507 = vld [vmem:[#allocation7 + $0x22c] sm:$0xff]
    %v508 = vld [vmem:[#allocation7 + $0x234] sm:$0xff]
    %v509 = vld [vmem:[#allocation7 + $0x23c] sm:$0xf]
    %v510 = vld [vmem:[#allocation7 + $0x240] sm:$0xff]
    %v511 = vld [vmem:[#allocation7 + $0x248] sm:$0xff]
    %v512 = vld [vmem:[#allocation7 + $0x250] sm:$0xff]
    %v513 = vld [vmem:[#allocation7 + $0x258] sm:$0xff]
    %v514 = vld [vmem:[#allocation7 + $0x260] sm:$0xf]
    %v515 = vld [vmem:[#allocation7 + $0x264] sm:$0xff]
    %v516 = vld [vmem:[#allocation7 + $0x26c] sm:$0xff]
    %v517 = vld [vmem:[#allocation7 + $0x274] sm:$0xff]
    %v518 = vld [vmem:[#allocation7 + $0x27c] sm:$0xff]
    %v519 = vld [vmem:[#allocation7 + $0x284] sm:$0xf]
    %v520 = vld [vmem:[#allocation7 + $0x288] sm:$0xff]
    %v521 = vld [vmem:[#allocation7 + $0x290] sm:$0xff]
    %v522 = vld [vmem:[#allocation7 + $0x298] sm:$0xff]
    %v523 = vld [vmem:[#allocation7 + $0x2a0] sm:$0xff]
    %v524 = vld [vmem:[#allocation7 + $0x2a8] sm:$0xf]
    %v525 = vld [vmem:[#allocation7 + $0x2ac] sm:$0xff]
    %v526 = vld [vmem:[#allocation7 + $0x2b4] sm:$0xff]
    %v527 = vld [vmem:[#allocation7 + $0x2bc] sm:$0xff]
    %v528 = vld [vmem:[#allocation7 + $0x2c4] sm:$0xff]
    %v529 = vld [vmem:[#allocation7 + $0x2cc] sm:$0xf]
    %v530 = vld [vmem:[#allocation7 + $0x2d0] sm:$0xff]
    %v531 = vld [vmem:[#allocation7 + $0x2d8] sm:$0xff]
    %v532 = vld [vmem:[#allocation7 + $0x2e0] sm:$0xff]
    %v533 = vld [vmem:[#allocation7 + $0x2e8] sm:$0xff]
    %v534 = vld [vmem:[#allocation7 + $0x2f0] sm:$0xf]
    %v535 = vld [vmem:[#allocation7 + $0x2f4] sm:$0xff]
    %v536 = vld [vmem:[#allocation7 + $0x2fc] sm:$0xff]
    %v537 = vld [vmem:[#allocation7 + $0x304] sm:$0xff]
    %v538 = vld [vmem:[#allocation7 + $0x30c] sm:$0xff]
    %v539 = vld [vmem:[#allocation7 + $0x314] sm:$0xf]
    %v540 = vld [vmem:[#allocation7 + $0x318] sm:$0xff]
    %v541 = vld [vmem:[#allocation7 + $0x320] sm:$0xff]
    %v542 = vld [vmem:[#allocation7 + $0x328] sm:$0xff]
    %v543 = vld [vmem:[#allocation7 + $0x330] sm:$0xff]
    %v544 = vld [vmem:[#allocation7 + $0x338] sm:$0xf]
    %v545 = vld [vmem:[#allocation7 + $0x33c] sm:$0xff]
    %v546 = vld [vmem:[#allocation7 + $0x344] sm:$0xff]
    %v547 = vld [vmem:[#allocation7 + $0x34c] sm:$0xff]
    %v548 = vld [vmem:[#allocation7 + $0x354] sm:$0xff]
    %v549 = vld [vmem:[#allocation7 + $0x35c] sm:$0xf]
    %v550 = vld [vmem:[#allocation7 + $0x360] sm:$0xff]
    %v551 = vld [vmem:[#allocation7 + $0x368] sm:$0xff]
    %v552 = vld [vmem:[#allocation7 + $0x370] sm:$0xff]
    %v553 = vld [vmem:[#allocation7 + $0x378] sm:$0xff]
    %v554 = vld [vmem:[#allocation7 + $0x380] sm:$0xf]
    %v555 = vld [vmem:[#allocation7 + $0x384] sm:$0xff]
    %v556 = vld [vmem:[#allocation7 + $0x38c] sm:$0xff]
    %v557 = vld [vmem:[#allocation7 + $0x394] sm:$0xff]
    %v558 = vld [vmem:[#allocation7 + $0x39c] sm:$0xff]
    %v559 = vld [vmem:[#allocation7 + $0x3a4] sm:$0xf]
    %v560 = vld [vmem:[#allocation7 + $0x3a8] sm:$0xff]
    %v561 = vld [vmem:[#allocation7 + $0x3b0] sm:$0xff]
    %v562 = vld [vmem:[#allocation7 + $0x3b8] sm:$0xff]
    %v563 = vld [vmem:[#allocation7 + $0x3c0] sm:$0xff]
    %v564 = vld [vmem:[#allocation7 + $0x3c8] sm:$0xf]
    %v565 = vld [vmem:[#allocation7 + $0x3cc] sm:$0xff]
    %v566 = vld [vmem:[#allocation7 + $0x3d4] sm:$0xff]
    %v567 = vld [vmem:[#allocation7 + $0x3dc] sm:$0xff]
    %v568 = vld [vmem:[#allocation7 + $0x3e4] sm:$0xff]
    %v569 = vld [vmem:[#allocation7 + $0x3ec] sm:$0xf]
    %v570 = vld [vmem:[#allocation7 + $0x3f0] sm:$0xff]
    %v571 = vld [vmem:[#allocation7 + $0x3f8] sm:$0xff]
    %v572 = vld [vmem:[#allocation7 + $0x400] sm:$0xff]
    %v573 = vld [vmem:[#allocation7 + $0x408] sm:$0xff]
    %v574 = vld [vmem:[#allocation7 + $0x410] sm:$0xf]
    %v575 = vld [vmem:[#allocation7 + $0x414] sm:$0xff]
    %v576 = vld [vmem:[#allocation7 + $0x41c] sm:$0xff]
    %v577 = vld [vmem:[#allocation7 + $0x424] sm:$0xff]
    %v578 = vld [vmem:[#allocation7 + $0x42c] sm:$0xff]
    %v579 = vld [vmem:[#allocation7 + $0x434] sm:$0xf]
    %v580 = vld [vmem:[#allocation7 + $0x438] sm:$0xff]
    %v581 = vld [vmem:[#allocation7 + $0x440] sm:$0xff]
    %v582 = vld [vmem:[#allocation7 + $0x448] sm:$0xff]
    %v583 = vld [vmem:[#allocation7 + $0x450] sm:$0xff]
    %v584 = vld [vmem:[#allocation7 + $0x458] sm:$0xf]
    %v585 = vld [vmem:[#allocation7 + $0x45c] sm:$0xff]
    %v586 = vld [vmem:[#allocation7 + $0x464] sm:$0xff]
    %v587 = vld [vmem:[#allocation7 + $0x46c] sm:$0xff]
    %v588 = vld [vmem:[#allocation7 + $0x474] sm:$0xff]
    %v589 = vld [vmem:[#allocation7 + $0x47c] sm:$0xf]
    %v590 = vld [vmem:[%s4] sm:$0xff]
    %v591 = vld [vmem:[%s4 + $0x8] sm:$0x1]
    %v594 = vlaneseq
    %v595 = vshrl.u32 %v594, 7
    %v596 = vsub.s32 0, %v595
    %v597 = vrot.slane %v590, %v596
    %v598 = vlaneseq
    %v599 = vshrl.u32 %v598, 7
    %v600 = vsub.s32 1, %v599
    %v601 = vrot.slane %v590, %v600
    %v602 = vlaneseq
    %v603 = vshrl.u32 %v602, 7
    %v604 = vsub.s32 2, %v603
    %v605 = vrot.slane %v590, %v604
    %v606 = vlaneseq
    %v607 = vshrl.u32 %v606, 7
    %v608 = vsub.s32 3, %v607
    %v609 = vrot.slane %v590, %v608
    %v610 = vlaneseq
    %v611 = vshrl.u32 %v610, 7
    %v612 = vsub.s32 4, %v611
    %v613 = vrot.slane %v590, %v612
    %v614 = vlaneseq
    %v615 = vshrl.u32 %v614, 7
    %v616 = vsub.s32 5, %v615
    %v617 = vrot.slane %v590, %v616
    %v618 = vlaneseq
    %v619 = vshrl.u32 %v618, 7
    %v620 = vsub.s32 6, %v619
    %v621 = vrot.slane %v590, %v620
    %v622 = vlaneseq
    %v623 = vshrl.u32 %v622, 7
    %v624 = vsub.s32 7, %v623
    %v625 = vrot.slane %v590, %v624
    %v626 = vlaneseq
    %v627 = vshrl.u32 %v626, 7
    %v628 = vsub.s32 0, %v627
    %v629 = vrot.slane %v591, %v628
    %v799 = vunpack.c.l.b16 %v430
    %v800 = vunpack.c.h.b16 %v430
    %v801 = vunpack.c.l.b16 %v431
    %v802 = vunpack.c.h.b16 %v431
    %v803 = vunpack.c.l.b16 %v432
    %v804 = vunpack.c.h.b16 %v432
    %v805 = vunpack.c.l.b16 %v433
    %v806 = vunpack.c.h.b16 %v433
    %v807 = vunpack.c.l.b16 %v434
    %v808 = vunpack.c.l.b16 %v435
    %v809 = vunpack.c.h.b16 %v435
    %v810 = vunpack.c.l.b16 %v436
    %v811 = vunpack.c.h.b16 %v436
    %v812 = vunpack.c.l.b16 %v437
    %v813 = vunpack.c.h.b16 %v437
    %v814 = vunpack.c.l.b16 %v438
    %v815 = vunpack.c.h.b16 %v438
    %v816 = vunpack.c.l.b16 %v439
    %v817 = vunpack.c.l.b16 %v440
    %v818 = vunpack.c.h.b16 %v440
    %v819 = vunpack.c.l.b16 %v441
    %v820 = vunpack.c.h.b16 %v441
    %v821 = vunpack.c.l.b16 %v442
    %v822 = vunpack.c.h.b16 %v442
    %v823 = vunpack.c.l.b16 %v443
    %v824 = vunpack.c.h.b16 %v443
    %v825 = vunpack.c.l.b16 %v444
    %v826 = vunpack.c.l.b16 %v445
    %v827 = vunpack.c.h.b16 %v445
    %v828 = vunpack.c.l.b16 %v446
    %v829 = vunpack.c.h.b16 %v446
    %v830 = vunpack.c.l.b16 %v447
    %v831 = vunpack.c.h.b16 %v447
    %v832 = vunpack.c.l.b16 %v448
    %v833 = vunpack.c.h.b16 %v448
    %v834 = vunpack.c.l.b16 %v449
    %v835 = vunpack.c.l.b16 %v450
    %v836 = vunpack.c.h.b16 %v450
    %v837 = vunpack.c.l.b16 %v451
    %v838 = vunpack.c.h.b16 %v451
    %v839 = vunpack.c.l.b16 %v452
    %v840 = vunpack.c.h.b16 %v452
    %v841 = vunpack.c.l.b16 %v453
    %v842 = vunpack.c.h.b16 %v453
    %v843 = vunpack.c.l.b16 %v454
    %v844 = vunpack.c.l.b16 %v455
    %v845 = vunpack.c.h.b16 %v455
    %v846 = vunpack.c.l.b16 %v456
    %v847 = vunpack.c.h.b16 %v456
    %v848 = vunpack.c.l.b16 %v457
    %v849 = vunpack.c.h.b16 %v457
    %v850 = vunpack.c.l.b16 %v458
    %v851 = vunpack.c.h.b16 %v458
    %v852 = vunpack.c.l.b16 %v459
    %v853 = vunpack.c.l.b16 %v460
    %v854 = vunpack.c.h.b16 %v460
    %v855 = vunpack.c.l.b16 %v461
    %v856 = vunpack.c.h.b16 %v461
    %v857 = vunpack.c.l.b16 %v462
    %v858 = vunpack.c.h.b16 %v462
    %v859 = vunpack.c.l.b16 %v463
    %v860 = vunpack.c.h.b16 %v463
    %v861 = vunpack.c.l.b16 %v464
    %v862 = vunpack.c.l.b16 %v465
    %v863 = vunpack.c.h.b16 %v465
    %v864 = vunpack.c.l.b16 %v466
    %v865 = vunpack.c.h.b16 %v466
    %v866 = vunpack.c.l.b16 %v467
    %v867 = vunpack.c.h.b16 %v467
    %v868 = vunpack.c.l.b16 %v468
    %v869 = vunpack.c.h.b16 %v468
    %v870 = vunpack.c.l.b16 %v469
    %v871 = vunpack.c.l.b16 %v470
    %v872 = vunpack.c.h.b16 %v470
    %v873 = vunpack.c.l.b16 %v471
    %v874 = vunpack.c.h.b16 %v471
    %v875 = vunpack.c.l.b16 %v472
    %v876 = vunpack.c.h.b16 %v472
    %v877 = vunpack.c.l.b16 %v473
    %v878 = vunpack.c.h.b16 %v473
    %v879 = vunpack.c.l.b16 %v474
    %v880 = vunpack.c.l.b16 %v475
    %v881 = vunpack.c.h.b16 %v475
    %v882 = vunpack.c.l.b16 %v476
    %v883 = vunpack.c.h.b16 %v476
    %v884 = vunpack.c.l.b16 %v477
    %v885 = vunpack.c.h.b16 %v477
    %v886 = vunpack.c.l.b16 %v478
    %v887 = vunpack.c.h.b16 %v478
    %v888 = vunpack.c.l.b16 %v479
    %v889 = vunpack.c.l.b16 %v480
    %v890 = vunpack.c.h.b16 %v480
    %v891 = vunpack.c.l.b16 %v481
    %v892 = vunpack.c.h.b16 %v481
    %v893 = vunpack.c.l.b16 %v482
    %v894 = vunpack.c.h.b16 %v482
    %v895 = vunpack.c.l.b16 %v483
    %v896 = vunpack.c.h.b16 %v483
    %v897 = vunpack.c.l.b16 %v484
    %v898 = vunpack.c.l.b16 %v485
    %v899 = vunpack.c.h.b16 %v485
    %v900 = vunpack.c.l.b16 %v486
    %v901 = vunpack.c.h.b16 %v486
    %v902 = vunpack.c.l.b16 %v487
    %v903 = vunpack.c.h.b16 %v487
    %v904 = vunpack.c.l.b16 %v488
    %v905 = vunpack.c.h.b16 %v488
    %v906 = vunpack.c.l.b16 %v489
    %v907 = vunpack.c.l.b16 %v490
    %v908 = vunpack.c.h.b16 %v490
    %v909 = vunpack.c.l.b16 %v491
    %v910 = vunpack.c.h.b16 %v491
    %v911 = vunpack.c.l.b16 %v492
    %v912 = vunpack.c.h.b16 %v492
    %v913 = vunpack.c.l.b16 %v493
    %v914 = vunpack.c.h.b16 %v493
    %v915 = vunpack.c.l.b16 %v494
    %v916 = vunpack.c.l.b16 %v495
    %v917 = vunpack.c.h.b16 %v495
    %v918 = vunpack.c.l.b16 %v496
    %v919 = vunpack.c.h.b16 %v496
    %v920 = vunpack.c.l.b16 %v497
    %v921 = vunpack.c.h.b16 %v497
    %v922 = vunpack.c.l.b16 %v498
    %v923 = vunpack.c.h.b16 %v498
    %v924 = vunpack.c.l.b16 %v499
    %v925 = vunpack.c.l.b16 %v500
    %v926 = vunpack.c.h.b16 %v500
    %v927 = vunpack.c.l.b16 %v501
    %v928 = vunpack.c.h.b16 %v501
    %v929 = vunpack.c.l.b16 %v502
    %v930 = vunpack.c.h.b16 %v502
    %v931 = vunpack.c.l.b16 %v503
    %v932 = vunpack.c.h.b16 %v503
    %v933 = vunpack.c.l.b16 %v504
    %v934 = vunpack.c.l.b16 %v505
    %v935 = vunpack.c.h.b16 %v505
    %v936 = vunpack.c.l.b16 %v506
    %v937 = vunpack.c.h.b16 %v506
    %v938 = vunpack.c.l.b16 %v507
    %v939 = vunpack.c.h.b16 %v507
    %v940 = vunpack.c.l.b16 %v508
    %v941 = vunpack.c.h.b16 %v508
    %v942 = vunpack.c.l.b16 %v509
    %v943 = vunpack.c.l.b16 %v510
    %v944 = vunpack.c.h.b16 %v510
    %v945 = vunpack.c.l.b16 %v511
    %v946 = vunpack.c.h.b16 %v511
    %v947 = vunpack.c.l.b16 %v512
    %v948 = vunpack.c.h.b16 %v512
    %v949 = vunpack.c.l.b16 %v513
    %v950 = vunpack.c.h.b16 %v513
    %v951 = vunpack.c.l.b16 %v514
    %v952 = vunpack.c.l.b16 %v515
    %v953 = vunpack.c.h.b16 %v515
    %v954 = vunpack.c.l.b16 %v516
    %v955 = vunpack.c.h.b16 %v516
    %v956 = vunpack.c.l.b16 %v517
    %v957 = vunpack.c.h.b16 %v517
    %v958 = vunpack.c.l.b16 %v518
    %v959 = vunpack.c.h.b16 %v518
    %v960 = vunpack.c.l.b16 %v519
    %v961 = vunpack.c.l.b16 %v520
    %v962 = vunpack.c.h.b16 %v520
    %v963 = vunpack.c.l.b16 %v521
    %v964 = vunpack.c.h.b16 %v521
    %v965 = vunpack.c.l.b16 %v522
    %v966 = vunpack.c.h.b16 %v522
    %v967 = vunpack.c.l.b16 %v523
    %v968 = vunpack.c.h.b16 %v523
    %v969 = vunpack.c.l.b16 %v524
    %v970 = vunpack.c.l.b16 %v525
    %v971 = vunpack.c.h.b16 %v525
    %v972 = vunpack.c.l.b16 %v526
    %v973 = vunpack.c.h.b16 %v526
    %v974 = vunpack.c.l.b16 %v527
    %v975 = vunpack.c.h.b16 %v527
    %v976 = vunpack.c.l.b16 %v528
    %v977 = vunpack.c.h.b16 %v528
    %v978 = vunpack.c.l.b16 %v529
    %v979 = vunpack.c.l.b16 %v530
    %v980 = vunpack.c.h.b16 %v530
    %v981 = vunpack.c.l.b16 %v531
    %v982 = vunpack.c.h.b16 %v531
    %v983 = vunpack.c.l.b16 %v532
    %v984 = vunpack.c.h.b16 %v532
    %v985 = vunpack.c.l.b16 %v533
    %v986 = vunpack.c.h.b16 %v533
    %v987 = vunpack.c.l.b16 %v534
    %v988 = vunpack.c.l.b16 %v535
    %v989 = vunpack.c.h.b16 %v535
    %v990 = vunpack.c.l.b16 %v536
    %v991 = vunpack.c.h.b16 %v536
    %v992 = vunpack.c.l.b16 %v537
    %v993 = vunpack.c.h.b16 %v537
    %v994 = vunpack.c.l.b16 %v538
    %v995 = vunpack.c.h.b16 %v538
    %v996 = vunpack.c.l.b16 %v539
    %v997 = vunpack.c.l.b16 %v540
    %v998 = vunpack.c.h.b16 %v540
    %v999 = vunpack.c.l.b16 %v541
    %v1000 = vunpack.c.h.b16 %v541
    %v1001 = vunpack.c.l.b16 %v542
    %v1002 = vunpack.c.h.b16 %v542
    %v1003 = vunpack.c.l.b16 %v543
    %v1004 = vunpack.c.h.b16 %v543
    %v1005 = vunpack.c.l.b16 %v544
    %v1006 = vunpack.c.l.b16 %v545
    %v1007 = vunpack.c.h.b16 %v545
    %v1008 = vunpack.c.l.b16 %v546
    %v1009 = vunpack.c.h.b16 %v546
    %v1010 = vunpack.c.l.b16 %v547
    %v1011 = vunpack.c.h.b16 %v547
    %v1012 = vunpack.c.l.b16 %v548
    %v1013 = vunpack.c.h.b16 %v548
    %v1014 = vunpack.c.l.b16 %v549
    %v1015 = vunpack.c.l.b16 %v550
    %v1016 = vunpack.c.h.b16 %v550
    %v1017 = vunpack.c.l.b16 %v551
    %v1018 = vunpack.c.h.b16 %v551
    %v1019 = vunpack.c.l.b16 %v552
    %v1020 = vunpack.c.h.b16 %v552
    %v1021 = vunpack.c.l.b16 %v553
    %v1022 = vunpack.c.h.b16 %v553
    %v1023 = vunpack.c.l.b16 %v554
    %v1024 = vunpack.c.l.b16 %v555
    %v1025 = vunpack.c.h.b16 %v555
    %v1026 = vunpack.c.l.b16 %v556
    %v1027 = vunpack.c.h.b16 %v556
    %v1028 = vunpack.c.l.b16 %v557
    %v1029 = vunpack.c.h.b16 %v557
    %v1030 = vunpack.c.l.b16 %v558
    %v1031 = vunpack.c.h.b16 %v558
    %v1032 = vunpack.c.l.b16 %v559
    %v1033 = vunpack.c.l.b16 %v560
    %v1034 = vunpack.c.h.b16 %v560
    %v1035 = vunpack.c.l.b16 %v561
    %v1036 = vunpack.c.h.b16 %v561
    %v1037 = vunpack.c.l.b16 %v562
    %v1038 = vunpack.c.h.b16 %v562
    %v1039 = vunpack.c.l.b16 %v563
    %v1040 = vunpack.c.h.b16 %v563
    %v1041 = vunpack.c.l.b16 %v564
    %v1042 = vunpack.c.l.b16 %v565
    %v1043 = vunpack.c.h.b16 %v565
    %v1044 = vunpack.c.l.b16 %v566
    %v1045 = vunpack.c.h.b16 %v566
    %v1046 = vunpack.c.l.b16 %v567
    %v1047 = vunpack.c.h.b16 %v567
    %v1048 = vunpack.c.l.b16 %v568
    %v1049 = vunpack.c.h.b16 %v568
    %v1050 = vunpack.c.l.b16 %v569
    %v1051 = vunpack.c.l.b16 %v570
    %v1052 = vunpack.c.h.b16 %v570
    %v1053 = vunpack.c.l.b16 %v571
    %v1054 = vunpack.c.h.b16 %v571
    %v1055 = vunpack.c.l.b16 %v572
    %v1056 = vunpack.c.h.b16 %v572
    %v1057 = vunpack.c.l.b16 %v573
    %v1058 = vunpack.c.h.b16 %v573
    %v1059 = vunpack.c.l.b16 %v574
    %v1060 = vunpack.c.l.b16 %v575
    %v1061 = vunpack.c.h.b16 %v575
    %v1062 = vunpack.c.l.b16 %v576
    %v1063 = vunpack.c.h.b16 %v576
    %v1064 = vunpack.c.l.b16 %v577
    %v1065 = vunpack.c.h.b16 %v577
    %v1066 = vunpack.c.l.b16 %v578
    %v1067 = vunpack.c.h.b16 %v578
    %v1068 = vunpack.c.l.b16 %v579
    %v1069 = vunpack.c.l.b16 %v580
    %v1070 = vunpack.c.h.b16 %v580
    %v1071 = vunpack.c.l.b16 %v581
    %v1072 = vunpack.c.h.b16 %v581
    %v1073 = vunpack.c.l.b16 %v582
    %v1074 = vunpack.c.h.b16 %v582
    %v1075 = vunpack.c.l.b16 %v583
    %v1076 = vunpack.c.h.b16 %v583
    %v1077 = vunpack.c.l.b16 %v584
    %v1078 = vunpack.c.l.b16 %v585
    %v1079 = vunpack.c.h.b16 %v585
    %v1080 = vunpack.c.l.b16 %v586
    %v1081 = vunpack.c.h.b16 %v586
    %v1082 = vunpack.c.l.b16 %v587
    %v1083 = vunpack.c.h.b16 %v587
    %v1084 = vunpack.c.l.b16 %v588
    %v1085 = vunpack.c.h.b16 %v588
    %v1086 = vunpack.c.l.b16 %v589
    %v1087 = vpack.c.b16 %v808, %v799
    %v1088 = vpack.c.b16 %v809, %v800
    %v1089 = vpack.c.b16 %v810, %v801
    %v1090 = vpack.c.b16 %v811, %v802
    %v1091 = vpack.c.b16 %v812, %v803
    %v1092 = vpack.c.b16 %v813, %v804
    %v1093 = vpack.c.b16 %v814, %v805
    %v1094 = vpack.c.b16 %v815, %v806
    %v1095 = vpack.c.b16 %v816, %v807
    %v1096 = vpack.c.b16 %v826, %v817
    %v1097 = vpack.c.b16 %v827, %v818
    %v1098 = vpack.c.b16 %v828, %v819
    %v1099 = vpack.c.b16 %v829, %v820
    %v1100 = vpack.c.b16 %v830, %v821
    %v1101 = vpack.c.b16 %v831, %v822
    %v1102 = vpack.c.b16 %v832, %v823
    %v1103 = vpack.c.b16 %v833, %v824
    %v1104 = vpack.c.b16 %v834, %v825
    %v1105 = vpack.c.b16 %v844, %v835
    %v1106 = vpack.c.b16 %v845, %v836
    %v1107 = vpack.c.b16 %v846, %v837
    %v1108 = vpack.c.b16 %v847, %v838
    %v1109 = vpack.c.b16 %v848, %v839
    %v1110 = vpack.c.b16 %v849, %v840
    %v1111 = vpack.c.b16 %v850, %v841
    %v1112 = vpack.c.b16 %v851, %v842
    %v1113 = vpack.c.b16 %v852, %v843
    %v1114 = vpack.c.b16 %v862, %v853
    %v1115 = vpack.c.b16 %v863, %v854
    %v1116 = vpack.c.b16 %v864, %v855
    %v1117 = vpack.c.b16 %v865, %v856
    %v1118 = vpack.c.b16 %v866, %v857
    %v1119 = vpack.c.b16 %v867, %v858
    %v1120 = vpack.c.b16 %v868, %v859
    %v1121 = vpack.c.b16 %v869, %v860
    %v1122 = vpack.c.b16 %v870, %v861
    %v1123 = vpack.c.b16 %v880, %v871
    %v1124 = vpack.c.b16 %v881, %v872
    %v1125 = vpack.c.b16 %v882, %v873
    %v1126 = vpack.c.b16 %v883, %v874
    %v1127 = vpack.c.b16 %v884, %v875
    %v1128 = vpack.c.b16 %v885, %v876
    %v1129 = vpack.c.b16 %v886, %v877
    %v1130 = vpack.c.b16 %v887, %v878
    %v1131 = vpack.c.b16 %v888, %v879
    %v1132 = vpack.c.b16 %v898, %v889
    %v1133 = vpack.c.b16 %v899, %v890
    %v1134 = vpack.c.b16 %v900, %v891
    %v1135 = vpack.c.b16 %v901, %v892
    %v1136 = vpack.c.b16 %v902, %v893
    %v1137 = vpack.c.b16 %v903, %v894
    %v1138 = vpack.c.b16 %v904, %v895
    %v1139 = vpack.c.b16 %v905, %v896
    %v1140 = vpack.c.b16 %v906, %v897
    %v1141 = vpack.c.b16 %v916, %v907
    %v1142 = vpack.c.b16 %v917, %v908
    %v1143 = vpack.c.b16 %v918, %v909
    %v1144 = vpack.c.b16 %v919, %v910
    %v1145 = vpack.c.b16 %v920, %v911
    %v1146 = vpack.c.b16 %v921, %v912
    %v1147 = vpack.c.b16 %v922, %v913
    %v1148 = vpack.c.b16 %v923, %v914
    %v1149 = vpack.c.b16 %v924, %v915
    %v1150 = vpack.c.b16 %v934, %v925
    %v1151 = vpack.c.b16 %v935, %v926
    %v1152 = vpack.c.b16 %v936, %v927
    %v1153 = vpack.c.b16 %v937, %v928
    %v1154 = vpack.c.b16 %v938, %v929
    %v1155 = vpack.c.b16 %v939, %v930
    %v1156 = vpack.c.b16 %v940, %v931
    %v1157 = vpack.c.b16 %v941, %v932
    %v1158 = vpack.c.b16 %v942, %v933
    %v1159 = vpack.c.b16 %v952, %v943
    %v1160 = vpack.c.b16 %v953, %v944
    %v1161 = vpack.c.b16 %v954, %v945
    %v1162 = vpack.c.b16 %v955, %v946
    %v1163 = vpack.c.b16 %v956, %v947
    %v1164 = vpack.c.b16 %v957, %v948
    %v1165 = vpack.c.b16 %v958, %v949
    %v1166 = vpack.c.b16 %v959, %v950
    %v1167 = vpack.c.b16 %v960, %v951
    %v1168 = vpack.c.b16 %v970, %v961
    %v1169 = vpack.c.b16 %v971, %v962
    %v1170 = vpack.c.b16 %v972, %v963
    %v1171 = vpack.c.b16 %v973, %v964
    %v1172 = vpack.c.b16 %v974, %v965
    %v1173 = vpack.c.b16 %v975, %v966
    %v1174 = vpack.c.b16 %v976, %v967
    %v1175 = vpack.c.b16 %v977, %v968
    %v1176 = vpack.c.b16 %v978, %v969
    %v1177 = vpack.c.b16 %v988, %v979
    %v1178 = vpack.c.b16 %v989, %v980
    %v1179 = vpack.c.b16 %v990, %v981
    %v1180 = vpack.c.b16 %v991, %v982
    %v1181 = vpack.c.b16 %v992, %v983
    %v1182 = vpack.c.b16 %v993, %v984
    %v1183 = vpack.c.b16 %v994, %v985
    %v1184 = vpack.c.b16 %v995, %v986
    %v1185 = vpack.c.b16 %v996, %v987
    %v1186 = vpack.c.b16 %v1006, %v997
    %v1187 = vpack.c.b16 %v1007, %v998
    %v1188 = vpack.c.b16 %v1008, %v999
    %v1189 = vpack.c.b16 %v1009, %v1000
    %v1190 = vpack.c.b16 %v1010, %v1001
    %v1191 = vpack.c.b16 %v1011, %v1002
    %v1192 = vpack.c.b16 %v1012, %v1003
    %v1193 = vpack.c.b16 %v1013, %v1004
    %v1194 = vpack.c.b16 %v1014, %v1005
    %v1195 = vpack.c.b16 %v1024, %v1015
    %v1196 = vpack.c.b16 %v1025, %v1016
    %v1197 = vpack.c.b16 %v1026, %v1017
    %v1198 = vpack.c.b16 %v1027, %v1018
    %v1199 = vpack.c.b16 %v1028, %v1019
    %v1200 = vpack.c.b16 %v1029, %v1020
    %v1201 = vpack.c.b16 %v1030, %v1021
    %v1202 = vpack.c.b16 %v1031, %v1022
    %v1203 = vpack.c.b16 %v1032, %v1023
    %v1204 = vpack.c.b16 %v1042, %v1033
    %v1205 = vpack.c.b16 %v1043, %v1034
    %v1206 = vpack.c.b16 %v1044, %v1035
    %v1207 = vpack.c.b16 %v1045, %v1036
    %v1208 = vpack.c.b16 %v1046, %v1037
    %v1209 = vpack.c.b16 %v1047, %v1038
    %v1210 = vpack.c.b16 %v1048, %v1039
    %v1211 = vpack.c.b16 %v1049, %v1040
    %v1212 = vpack.c.b16 %v1050, %v1041
    %v1213 = vpack.c.b16 %v1060, %v1051
    %v1214 = vpack.c.b16 %v1061, %v1052
    %v1215 = vpack.c.b16 %v1062, %v1053
    %v1216 = vpack.c.b16 %v1063, %v1054
    %v1217 = vpack.c.b16 %v1064, %v1055
    %v1218 = vpack.c.b16 %v1065, %v1056
    %v1219 = vpack.c.b16 %v1066, %v1057
    %v1220 = vpack.c.b16 %v1067, %v1058
    %v1221 = vpack.c.b16 %v1068, %v1059
    %v1222 = vpack.c.b16 %v1078, %v1069
    %v1223 = vpack.c.b16 %v1079, %v1070
    %v1224 = vpack.c.b16 %v1080, %v1071
    %v1225 = vpack.c.b16 %v1081, %v1072
    %v1226 = vpack.c.b16 %v1082, %v1073
    %v1227 = vpack.c.b16 %v1083, %v1074
    %v1228 = vpack.c.b16 %v1084, %v1075
    %v1229 = vpack.c.b16 %v1085, %v1076
    %v1230 = vpack.c.b16 %v1086, %v1077
    %1375 = vmatprep.subr.bf16.mxu0 %v1088
    %1376 = vmatpush1.bf16.msra.mxu0 %v1087
    %1377 = vmatprep.subr.bf16.mxu0 %v1097
    %1378 = vmatpush1.bf16.msra.mxu0 %v1096
    %1379 = vmatprep.subr.bf16.mxu0 %v1106
    %1380 = vmatpush1.bf16.msra.mxu0 %v1105
    %1381 = vmatprep.subr.bf16.mxu0 %v1115
    %1382 = vmatpush1.bf16.msra.mxu0 %v1114
    %1383 = vmatprep.subr.bf16.mxu0 %v1124
    %1384 = vmatpush1.bf16.msra.mxu0 %v1123
    %1385 = vmatprep.subr.bf16.mxu0 %v1133
    %1386 = vmatpush1.bf16.msra.mxu0 %v1132
    %1387 = vmatprep.subr.bf16.mxu0 %v1142
    %1388 = vmatpush1.bf16.msra.mxu0 %v1141
    %1389 = vmatprep.subr.bf16.mxu0 %v1151
    %1390 = vmatpush1.bf16.msra.mxu0 %v1150
    %1391 = vmatprep.subr.bf16.mxu0 %v1160
    %1392 = vmatpush1.bf16.msra.mxu0 %v1159
    %1393 = vmatprep.subr.bf16.mxu0 %v1169
    %1394 = vmatpush1.bf16.msra.mxu0 %v1168
    %1395 = vmatprep.subr.bf16.mxu0 %v1178
    %1396 = vmatpush1.bf16.msra.mxu0 %v1177
    %1397 = vmatprep.subr.bf16.mxu0 %v1187
    %1398 = vmatpush1.bf16.msra.mxu0 %v1186
    %1399 = vmatprep.subr.bf16.mxu0 %v1196
    %1400 = vmatpush1.bf16.msra.mxu0 %v1195
    %1401 = vmatprep.subr.bf16.mxu0 %v1205
    %1402 = vmatpush1.bf16.msra.mxu0 %v1204
    %1403 = vmatprep.subr.bf16.mxu0 %v1214
    %1404 = vmatpush1.bf16.msra.mxu0 %v1213
    %1405 = vmatprep.subr.bf16.mxu0 %v1223
    %1406 = vmatpush1.bf16.msra.mxu0 %v1222
    %1407 = vmatprep.mubr.bf16.mxu0 %v429
    %1408 = vmatmul.mubr.bf16.gmra.mrb[0].mxu0 %v428
    %v1409 = vpop.f32.mrb[0].mxu0
    %v1410 = vadd.f32 %v597, %v1409
    %v1411 = vpop.f32.mrb[0].mxu0
    %v1412 = vadd.f32 %v601, %v1411
    %v1413 = vpop.f32.mrb[0].mxu0
    %v1414 = vadd.f32 %v597, %v1413
    %v1415 = vpop.f32.mrb[0].mxu0
    %v1416 = vadd.f32 %v601, %v1415
    %1417 = vdwg.mxu0
    %1418 = vmatprep.subr.bf16.mxu0 %v1090
    %1419 = vmatpush1.bf16.msra.mxu0 %v1089
    %1420 = vmatprep.subr.bf16.mxu0 %v1099
    %1421 = vmatpush1.bf16.msra.mxu0 %v1098
    %1422 = vmatprep.subr.bf16.mxu0 %v1108
    %1423 = vmatpush1.bf16.msra.mxu0 %v1107
    %1424 = vmatprep.subr.bf16.mxu0 %v1117
    %1425 = vmatpush1.bf16.msra.mxu0 %v1116
    %1426 = vmatprep.subr.bf16.mxu0 %v1126
    %1427 = vmatpush1.bf16.msra.mxu0 %v1125
    %1428 = vmatprep.subr.bf16.mxu0 %v1135
    %1429 = vmatpush1.bf16.msra.mxu0 %v1134
    %1430 = vmatprep.subr.bf16.mxu0 %v1144
    %1431 = vmatpush1.bf16.msra.mxu0 %v1143
    %1432 = vmatprep.subr.bf16.mxu0 %v1153
    %1433 = vmatpush1.bf16.msra.mxu0 %v1152
    %1434 = vmatprep.subr.bf16.mxu0 %v1162
    %1435 = vmatpush1.bf16.msra.mxu0 %v1161
    %1436 = vmatprep.subr.bf16.mxu0 %v1171
    %1437 = vmatpush1.bf16.msra.mxu0 %v1170
    %1438 = vmatprep.subr.bf16.mxu0 %v1180
    %1439 = vmatpush1.bf16.msra.mxu0 %v1179
    %1440 = vmatprep.subr.bf16.mxu0 %v1189
    %1441 = vmatpush1.bf16.msra.mxu0 %v1188
    %1442 = vmatprep.subr.bf16.mxu0 %v1198
    %1443 = vmatpush1.bf16.msra.mxu0 %v1197
    %1444 = vmatprep.subr.bf16.mxu0 %v1207
    %1445 = vmatpush1.bf16.msra.mxu0 %v1206
    %1446 = vmatprep.subr.bf16.mxu0 %v1216
    %1447 = vmatpush1.bf16.msra.mxu0 %v1215
    %1448 = vmatprep.subr.bf16.mxu0 %v1225
    %1449 = vmatpush1.bf16.msra.mxu0 %v1224
    %1450 = vmatprep.mubr.bf16.mxu0 %v429
    %1451 = vmatmul.mubr.bf16.gmra.mrb[0].mxu0 %v428
    %v1452 = vpop.f32.mrb[0].mxu0
    %v1453 = vadd.f32 %v605, %v1452
    %v1454 = vpop.f32.mrb[0].mxu0
    %v1455 = vadd.f32 %v609, %v1454
    %v1456 = vpop.f32.mrb[0].mxu0
    %v1457 = vadd.f32 %v605, %v1456
    %v1458 = vpop.f32.mrb[0].mxu0
    %v1459 = vadd.f32 %v609, %v1458
    %1460 = vdwg.mxu0
    %1461 = vmatprep.subr.bf16.mxu0 %v1092
    %1462 = vmatpush1.bf16.msra.mxu0 %v1091
    %1463 = vmatprep.subr.bf16.mxu0 %v1101
    %1464 = vmatpush1.bf16.msra.mxu0 %v1100
    %1465 = vmatprep.subr.bf16.mxu0 %v1110
    %1466 = vmatpush1.bf16.msra.mxu0 %v1109
    %1467 = vmatprep.subr.bf16.mxu0 %v1119
    %1468 = vmatpush1.bf16.msra.mxu0 %v1118
    %1469 = vmatprep.subr.bf16.mxu0 %v1128
    %1470 = vmatpush1.bf16.msra.mxu0 %v1127
    %1471 = vmatprep.subr.bf16.mxu0 %v1137
    %1472 = vmatpush1.bf16.msra.mxu0 %v1136
    %1473 = vmatprep.subr.bf16.mxu0 %v1146
    %1474 = vmatpush1.bf16.msra.mxu0 %v1145
    %1475 = vmatprep.subr.bf16.mxu0 %v1155
    %1476 = vmatpush1.bf16.msra.mxu0 %v1154
    %1477 = vmatprep.subr.bf16.mxu0 %v1164
    %1478 = vmatpush1.bf16.msra.mxu0 %v1163
    %1479 = vmatprep.subr.bf16.mxu0 %v1173
    %1480 = vmatpush1.bf16.msra.mxu0 %v1172
    %1481 = vmatprep.subr.bf16.mxu0 %v1182
    %1482 = vmatpush1.bf16.msra.mxu0 %v1181
    %1483 = vmatprep.subr.bf16.mxu0 %v1191
    %1484 = vmatpush1.bf16.msra.mxu0 %v1190
    %1485 = vmatprep.subr.bf16.mxu0 %v1200
    %1486 = vmatpush1.bf16.msra.mxu0 %v1199
    %1487 = vmatprep.subr.bf16.mxu0 %v1209
    %1488 = vmatpush1.bf16.msra.mxu0 %v1208
    %1489 = vmatprep.subr.bf16.mxu0 %v1218
    %1490 = vmatpush1.bf16.msra.mxu0 %v1217
    %1491 = vmatprep.subr.bf16.mxu0 %v1227
    %1492 = vmatpush1.bf16.msra.mxu0 %v1226
    %1493 = vmatprep.mubr.bf16.mxu0 %v429
    %1494 = vmatmul.mubr.bf16.gmra.mrb[0].mxu0 %v428
    %v1495 = vpop.f32.mrb[0].mxu0
    %v1496 = vadd.f32 %v613, %v1495
    %v1497 = vpop.f32.mrb[0].mxu0
    %v1498 = vadd.f32 %v617, %v1497
    %v1499 = vpop.f32.mrb[0].mxu0
    %v1500 = vadd.f32 %v613, %v1499
    %v1501 = vpop.f32.mrb[0].mxu0
    %v1502 = vadd.f32 %v617, %v1501
    %1503 = vdwg.mxu0
    %1504 = vmatprep.subr.bf16.mxu0 %v1094
    %1505 = vmatpush1.bf16.msra.mxu0 %v1093
    %1506 = vmatprep.subr.bf16.mxu0 %v1103
    %1507 = vmatpush1.bf16.msra.mxu0 %v1102
    %1508 = vmatprep.subr.bf16.mxu0 %v1112
    %1509 = vmatpush1.bf16.msra.mxu0 %v1111
    %1510 = vmatprep.subr.bf16.mxu0 %v1121
    %1511 = vmatpush1.bf16.msra.mxu0 %v1120
    %1512 = vmatprep.subr.bf16.mxu0 %v1130
    %1513 = vmatpush1.bf16.msra.mxu0 %v1129
    %1514 = vmatprep.subr.bf16.mxu0 %v1139
    %1515 = vmatpush1.bf16.msra.mxu0 %v1138
    %1516 = vmatprep.subr.bf16.mxu0 %v1148
    %1517 = vmatpush1.bf16.msra.mxu0 %v1147
    %1518 = vmatprep.subr.bf16.mxu0 %v1157
    %1519 = vmatpush1.bf16.msra.mxu0 %v1156
    %1520 = vmatprep.subr.bf16.mxu0 %v1166
    %1521 = vmatpush1.bf16.msra.mxu0 %v1165
    %1522 = vmatprep.subr.bf16.mxu0 %v1175
    %1523 = vmatpush1.bf16.msra.mxu0 %v1174
    %1524 = vmatprep.subr.bf16.mxu0 %v1184
    %1525 = vmatpush1.bf16.msra.mxu0 %v1183
    %1526 = vmatprep.subr.bf16.mxu0 %v1193
    %1527 = vmatpush1.bf16.msra.mxu0 %v1192
    %1528 = vmatprep.subr.bf16.mxu0 %v1202
    %1529 = vmatpush1.bf16.msra.mxu0 %v1201
    %1530 = vmatprep.subr.bf16.mxu0 %v1211
    %1531 = vmatpush1.bf16.msra.mxu0 %v1210
    %1532 = vmatprep.subr.bf16.mxu0 %v1220
    %1533 = vmatpush1.bf16.msra.mxu0 %v1219
    %1534 = vmatprep.subr.bf16.mxu0 %v1229
    %1535 = vmatpush1.bf16.msra.mxu0 %v1228
    %1536 = vmatprep.mubr.bf16.mxu0 %v429
    %1537 = vmatmul.mubr.bf16.gmra.mrb[0].mxu0 %v428
    %v1538 = vpop.f32.mrb[0].mxu0
    %v1539 = vadd.f32 %v621, %v1538
    %v1540 = vpop.f32.mrb[0].mxu0
    %v1541 = vadd.f32 %v625, %v1540
    %v1542 = vpop.f32.mrb[0].mxu0
    %v1543 = vadd.f32 %v621, %v1542
    %v1544 = vpop.f32.mrb[0].mxu0
    %v1545 = vadd.f32 %v625, %v1544
    %1546 = vdwg.mxu0
    %1547 = vmatprep.subr.bf16.mxu0 0
    %1548 = vmatpush1.bf16.msra.mxu0 %v1095
    %1549 = vmatprep.subr.bf16.mxu0 0
    %1550 = vmatpush1.bf16.msra.mxu0 %v1104
    %1551 = vmatprep.subr.bf16.mxu0 0
    %1552 = vmatpush1.bf16.msra.mxu0 %v1113
    %1553 = vmatprep.subr.bf16.mxu0 0
    %1554 = vmatpush1.bf16.msra.mxu0 %v1122
    %1555 = vmatprep.subr.bf16.mxu0 0
    %1556 = vmatpush1.bf16.msra.mxu0 %v1131
    %1557 = vmatprep.subr.bf16.mxu0 0
    %1558 = vmatpush1.bf16.msra.mxu0 %v1140
    %1559 = vmatprep.subr.bf16.mxu0 0
    %1560 = vmatpush1.bf16.msra.mxu0 %v1149
    %1561 = vmatprep.subr.bf16.mxu0 0
    %1562 = vmatpush1.bf16.msra.mxu0 %v1158
    %1563 = vmatprep.subr.bf16.mxu0 0
    %1564 = vmatpush1.bf16.msra.mxu0 %v1167
    %1565 = vmatprep.subr.bf16.mxu0 0
    %1566 = vmatpush1.bf16.msra.mxu0 %v1176
    %1567 = vmatprep.subr.bf16.mxu0 0
    %1568 = vmatpush1.bf16.msra.mxu0 %v1185
    %1569 = vmatprep.subr.bf16.mxu0 0
    %1570 = vmatpush1.bf16.msra.mxu0 %v1194
    %1571 = vmatprep.subr.bf16.mxu0 0
    %1572 = vmatpush1.bf16.msra.mxu0 %v1203
    %1573 = vmatprep.subr.bf16.mxu0 0
    %1574 = vmatpush1.bf16.msra.mxu0 %v1212
    %1575 = vmatprep.subr.bf16.mxu0 0
    %1576 = vmatpush1.bf16.msra.mxu0 %v1221
    %1577 = vmatprep.subr.bf16.mxu0 0
    %1578 = vmatpush1.bf16.msra.mxu0 %v1230
    %1579 = vmatprep.mubr.bf16.mxu0 %v429
    %1580 = vmatmul.mubr.bf16.gmra.mrb[0].mxu0 %v428
    %v1581 = vpop.f32.mrb[0].mxu0
    %v1582 = vadd.f32 %v629, %v1581
    %v1583 = vpop.f32.mrb[0].mxu0
    %v1584 = vpop.f32.mrb[0].mxu0
    %v1585 = vadd.f32 %v629, %v1584
    %v1586 = vpop.f32.mrb[0].mxu0
    %1587 = vdwg.mxu0
    %1588 = vst [vmem:[#allocation9] sm:$0xff] %v1410
    %1589 = vst [vmem:[#allocation9 + $0x8] sm:$0xff] %v1412
    %1590 = vst.msk [vmem:[#allocation9 + $0x10] sm:$0xff] %vm330, %v1453
    %1591 = vst [vmem:[#allocation9 + $0x18] sm:$0xff] %v1414
    %1592 = vst [vmem:[#allocation9 + $0x20] sm:$0xff] %v1416
    %1593 = vst.msk [vmem:[#allocation9 + $0x28] sm:$0xff] %vm330, %v1457
    %1594 = vst [vmem:[#allocation11] sm:$0xff] %v1455
    %1595 = vst [vmem:[#allocation11 + $0x8] sm:$0xff] %v1496
    %1596 = vst.msk [vmem:[#allocation11 + $0x10] sm:$0xff] %vm330, %v1498
    %1597 = vst [vmem:[#allocation11 + $0x18] sm:$0xff] %v1459
    %1598 = vst [vmem:[#allocation11 + $0x20] sm:$0xff] %v1500
    %1599 = vst.msk [vmem:[#allocation11 + $0x28] sm:$0xff] %vm330, %v1502
    %1600 = vst [vmem:[#allocation12] sm:$0xff] %v1539
    %1601 = vst [vmem:[#allocation12 + $0x8] sm:$0xff] %v1541
    %1602 = vst.msk [vmem:[#allocation12 + $0x10] sm:$0xff] %vm330, %v1582
    %1603 = vst [vmem:[#allocation12 + $0x18] sm:$0xff] %v1543
    %1604 = vst [vmem:[#allocation12 + $0x20] sm:$0xff] %v1545
    %1605 = vst.msk [vmem:[#allocation12 + $0x28] sm:$0xff] %vm330, %v1585
    // Predicated region
    $region34: #{_forward_impl.1} parent=1 // pred_check
      _
    $region35: #{_forward_impl.1} parent=1 // pred_check_branch
      %1607 = sbr.rel (0) target = $region37
    $region36: #{_forward_impl.1} parent=1 // pred_region
      %s1609 = ssub.s32 512, 512
      %1610 = vsyncadd [#allocation4], %s1609
      %s1611 = sshll.u32 [#allocation8], 4
      %s1612 = int_to_ptr.vmem [resolvable:$true] %s1611
      %1617 = dma.vmem_to_hbm [thread:$0]  %s1612, 512, %s5, [#allocation4], 256, 256, 16
    $region37: #{_forward_impl.1} parent=1 // pred_fallthru
      _
    // Predicated region
    $region38: #{_forward_impl.1} parent=1 // pred_check
      _
    $region39: #{_forward_impl.1} parent=1 // pred_check_branch
      %1619 = sbr.rel (0) target = $region41
    $region40: #{_forward_impl.1} parent=1 // pred_region
      %s1621 = ssub.s32 768, 768
      %1622 = vsyncadd [#allocation10], %s1621
      %s1623 = sshll.u32 [#allocation9], 4
      %s1624 = int_to_ptr.vmem [resolvable:$true] %s1623
      %1629 = dma.vmem_to_hbm [thread:$0]  %s1624, 768, %s6, [#allocation10], 384, 384, 24
    $region41: #{_forward_impl.1} parent=1 // pred_fallthru
      _
    // Predicated region
    $region42: #{_forward_impl.1} parent=1 // pred_check
      _
    $region43: #{_forward_impl.1} parent=1 // pred_check_branch
      %1631 = sbr.rel (0) target = $region45
    $region44: #{_forward_impl.1} parent=1 // pred_region
      %s1633 = ssub.s32 768, 768
      %1634 = vsyncadd [#allocation10], %s1633
      %s1635 = sshll.u32 [#allocation11], 4
      %s1636 = int_to_ptr.vmem [resolvable:$true] %s1635
      %1641 = dma.vmem_to_hbm [thread:$0]  %s1636, 768, %s7, [#allocation10], 384, 384, 24
    $region45: #{_forward_impl.1} parent=1 // pred_fallthru
      _
    // Predicated region
    $region46: #{_forward_impl.1} parent=1 // pred_check
      _
    $region47: #{_forward_impl.1} parent=1 // pred_check_branch
      %1643 = sbr.rel (0) target = $region49
    $region48: #{_forward_impl.1} parent=1 // pred_region
      %s1645 = ssub.s32 768, 768
      %1646 = vsyncadd [#allocation13], %s1645
      %s1647 = sshll.u32 [#allocation12], 4
      %s1648 = int_to_ptr.vmem [resolvable:$true] %s1647
      %1653 = dma.vmem_to_hbm [thread:$0]  %s1648, 768, %s8, [#allocation13], 384, 384, 24
    $region49: #{_forward_impl.1} parent=1 // pred_fallthru
      _
    // Predicated region
    $region50: #{_forward_impl.1} parent=1 // pred_check
      _
    $region51: #{_forward_impl.1} parent=1 // pred_check_branch
      %1655 = sbr.rel (0) target = $region53
    $region52: #{_forward_impl.1} parent=1 // pred_region
      %1656 = dma.done [#allocation4], 512
    $region53: #{_forward_impl.1} parent=1 // pred_fallthru
      _
    // Predicated region
    $region54: #{_forward_impl.1} parent=1 // pred_check
      _
    $region55: #{_forward_impl.1} parent=1 // pred_check_branch
      %1658 = sbr.rel (0) target = $region57
    $region56: #{_forward_impl.1} parent=1 // pred_region
      %1659 = dma.done [#allocation10], 768
    $region57: #{_forward_impl.1} parent=1 // pred_fallthru
      _
    // Predicated region
    $region58: #{_forward_impl.1} parent=1 // pred_check
      _
    $region59: #{_forward_impl.1} parent=1 // pred_check_branch
      %1661 = sbr.rel (0) target = $region61
    $region60: #{_forward_impl.1} parent=1 // pred_region
      %1662 = dma.done [#allocation10], 768
    $region61: #{_forward_impl.1} parent=1 // pred_fallthru
      _
    // Predicated region
    $region62: #{_forward_impl.1} parent=1 // pred_check
      _
    $region63: #{_forward_impl.1} parent=1 // pred_check_branch
      %1664 = sbr.rel (0) target = $region65
    $region64: #{_forward_impl.1} parent=1 // pred_region
      %1665 = dma.done [#allocation13], 768
    $region65: #{_forward_impl.1} parent=1 // pred_fallthru
      _
    %1666 = vsyncpa [#allocation3], 1
    %1667 = vsyncpa [#allocation6], 1
    %1668 = vsyncpa [#allocation4], 1
    %1669 = vsyncpa [#allocation10], 1
    %1670 = vsyncpa [#allocation13], 1

</llo_original>
